<compile_context>
chip_gen: v5e
topology: v5e:2x2
jax: 0.10.0
libtpu: 0.0.40
codegen_flags: <defaults>
</compile_context>

<pallas_src>
import jax
import jax.numpy as jnp
from jax.experimental import pallas as pl
from jax.experimental.pallas import tpu as pltpu


def lstm_last_linear_kernel(x_ref, wih_ref, whh_ref, b_ref, wout_ref, bout_ref,
                            out_ref):
    """Whole LSTM recurrence + final Linear inside one kernel (all VMEM resident).

    x_ref   : (T*BP, D)    time-major, flattened over (T, BP), batch padded
    wih_ref : (D, 4*HP)    input->gates weight, gate-padded to HP lanes per gate
    whh_ref : (HP, 4*HP)   hidden->gates weight, gate-padded
    b_ref   : (1, 4*HP)    bias_ih + bias_hh, gate-padded (zeros in pad lanes)
    wout_ref: (HP, OP)     linear weight (rows >= H and cols >= O are zero)
    bout_ref: (1, OP)      linear bias (zero-padded to OP lanes)
    out_ref : (BP, OP)     lane-dense output; caller slices [:B, :O]
    """
    TB, _ = x_ref.shape
    HP = whh_ref.shape[0]
    BP = out_ref.shape[0]
    T = TB // BP

    whh = whh_ref[...]

    # Hoisted input projection + bias: one MXU matmul covering all timesteps.
    xw = (jnp.dot(x_ref[...], wih_ref[...], preferred_element_type=jnp.float32)
          + b_ref[...])                                   # (T*BP, 4*HP)

    h = jnp.zeros((BP, HP), jnp.float32)
    c = jnp.zeros((BP, HP), jnp.float32)

    # Statically unrolled time loop: only the recurrent matmul + gate math sit
    # on the serial dependence chain; all slice offsets are Python constants.
    for t in range(T):
        gates = (xw[t * BP:(t + 1) * BP, :]
                 + jnp.dot(h, whh, preferred_element_type=jnp.float32))
        # Gate order matches PyTorch: [i, f, g, o]; slices are 128-lane aligned.
        i_g = jax.nn.sigmoid(gates[:, 0 * HP:1 * HP])
        f_g = jax.nn.sigmoid(gates[:, 1 * HP:2 * HP])
        g_g = jnp.tanh(gates[:, 2 * HP:3 * HP])
        o_g = jax.nn.sigmoid(gates[:, 3 * HP:4 * HP])
        c = f_g * c + i_g * g_g
        h = o_g * jnp.tanh(c)

    # Linear on the last timestep's hidden state; unmasked full-vreg store.
    out_ref[...] = (jnp.dot(h, wout_ref[...],
                            preferred_element_type=jnp.float32)
                    + bout_ref[...])


def prepare_params(params):
    """One-time layout prep: transpose, combine biases, pad gates/output to 128 lanes."""
    w_ih, w_hh, b_ih, b_hh, w_out, b_out = (
        params["w_ih"], params["w_hh"], params["b_ih"], params["b_hh"],
        params["w_out"], params["b_out"])
    D = w_ih.shape[1]
    H = w_hh.shape[1]
    O = w_out.shape[0]
    HP = ((H + 127) // 128) * 128          # pad hidden size to a vreg lane multiple
    OP = ((O + 127) // 128) * 128          # pad output size -> lane-dense store

    wih_t = jnp.transpose(w_ih)            # (D, 4H)
    whh_t = jnp.transpose(w_hh)            # (H, 4H)
    b = b_ih + b_hh                        # (4H,)
    wout_t = jnp.transpose(w_out)          # (H, O)

    wih_p = jnp.zeros((D, 4 * HP), jnp.float32)
    whh_p = jnp.zeros((HP, 4 * HP), jnp.float32)
    b_p = jnp.zeros((1, 4 * HP), jnp.float32)
    for g in range(4):
        wih_p = wih_p.at[:, g * HP:g * HP + H].set(wih_t[:, g * H:(g + 1) * H])
        whh_p = whh_p.at[:H, g * HP:g * HP + H].set(whh_t[:, g * H:(g + 1) * H])
        b_p = b_p.at[0, g * HP:g * HP + H].set(b[g * H:(g + 1) * H])
    wout_p = jnp.zeros((HP, OP), jnp.float32).at[:H, :O].set(wout_t)
    bout_p = jnp.zeros((1, OP), jnp.float32).at[0, :O].set(b_out)

    return {"wih": wih_p, "whh": whh_p, "b": b_p, "wout": wout_p, "bout": bout_p}


def multi_sensor_lstm_forward(x_btd, prep, *, out_size):
    """x_btd: (B, T, D) float32, matching the PyTorch batch_first input."""
    B, T, D = x_btd.shape
    OP = prep["wout"].shape[1]

    # Pad batch to a full sublane group so the kernel works on whole (8,128) vregs.
    BP = ((B + 7) // 8) * 8
    if BP != B:
        x_btd = jnp.pad(x_btd, ((0, BP - B), (0, 0), (0, 0)))

    # Layout plumbing in plain JAX: batch-first -> time-major, flatten (T, BP).
    x_tb = jnp.transpose(x_btd, (1, 0, 2)).reshape(T * BP, D)

    vmem = pl.BlockSpec(memory_space=pltpu.MemorySpace.VMEM)
    out_p = pl.pallas_call(
        lstm_last_linear_kernel,
        out_shape=jax.ShapeDtypeStruct((BP, OP), jnp.float32),
        in_specs=[vmem] * 6,
        out_specs=vmem,
    )(x_tb, prep["wih"], prep["whh"], prep["b"], prep["wout"], prep["bout"])

    return out_p[:B, :out_size]


def reference_forward(x_btd, params):
    """Pure-JAX reference replicating PyTorch nn.LSTM + nn.Linear semantics."""
    w_ih, w_hh, b_ih, b_hh, w_out, b_out = (
        params["w_ih"], params["w_hh"], params["b_ih"], params["b_hh"],
        params["w_out"], params["b_out"])
    B, T, D = x_btd.shape
    H = w_hh.shape[1]

    def step(carry, x_t):
        h, c = carry
        gates = x_t @ w_ih.T + b_ih + h @ w_hh.T + b_hh
        i_g = jax.nn.sigmoid(gates[:, 0 * H:1 * H])
        f_g = jax.nn.sigmoid(gates[:, 1 * H:2 * H])
        g_g = jnp.tanh(gates[:, 2 * H:3 * H])
        o_g = jax.nn.sigmoid(gates[:, 3 * H:4 * H])
        c = f_g * c + i_g * g_g
        h = o_g * jnp.tanh(c)
        return (h, c), None

    h0 = jnp.zeros((B, H), jnp.float32)
    c0 = jnp.zeros((B, H), jnp.float32)
    (h_last, _), _ = jax.lax.scan(step, (h0, c0),
                                  jnp.transpose(x_btd, (1, 0, 2)))
    return h_last @ w_out.T + b_out


def init_params(key, input_size, hidden_size, output_size):
    """Deterministic synthetic init (uniform like PyTorch's default)."""
    ks = jax.random.split(key, 6)
    bound = 1.0 / jnp.sqrt(hidden_size)
    u = lambda k, shape: jax.random.uniform(k, shape, jnp.float32, -bound, bound)
    return {
        "w_ih": u(ks[0], (4 * hidden_size, input_size)),
        "w_hh": u(ks[1], (4 * hidden_size, hidden_size)),
        "b_ih": u(ks[2], (4 * hidden_size,)),
        "b_hh": u(ks[3], (4 * hidden_size,)),
        "w_out": u(ks[4], (output_size, hidden_size)),
        "b_out": u(ks[5], (output_size,)),
    }


if __name__ == "__main__":
    B, T, D = 4, 8, 16          # batch, seq len, config.input_size
    H, O = 32, 8                # config.hidden_layer_size, output_size

    key = jax.random.PRNGKey(0)
    k_x, k_p = jax.random.split(key)
    x = jax.random.normal(k_x, (B, T, D), jnp.float32)
    params = init_params(k_p, D, H, O)

    prep = prepare_params(params)               # one-time weight layout prep
    fwd = jax.jit(multi_sensor_lstm_forward, static_argnames=("out_size",))
    out = fwd(x, prep, out_size=O)
    out = jax.block_until_ready(out)

    ref = reference_forward(x, params)
    assert out.shape == (B, O)
    assert jnp.allclose(out, ref, atol=1e-5, rtol=1e-5), "mismatch vs reference"

    print("KERNEL_OK")
</pallas_src>

<mosaic_0001>
module attributes {stable_mosaic.version = 11 : i64} {
  func.func @lstm_last_linear_kernel(%arg0: memref<64x16xf32, #tpu.memory_space<vmem>>, %arg1: memref<16x512xf32, #tpu.memory_space<vmem>>, %arg2: memref<128x512xf32, #tpu.memory_space<vmem>>, %arg3: memref<1x512xf32, #tpu.memory_space<vmem>>, %arg4: memref<128x128xf32, #tpu.memory_space<vmem>>, %arg5: memref<1x128xf32, #tpu.memory_space<vmem>>, %arg6: memref<8x128xf32, #tpu.memory_space<vmem>>) attributes {dimension_semantics = [], scalar_prefetch = 0 : i64, scratch_operands = 0 : i64, tpu.core_type = #tpu.core_type<tc>} {
    %c0 = arith.constant 0 : index
    %c0_0 = arith.constant 0 : index
    %0 = vector.load %arg2[%c0, %c0_0] : memref<128x512xf32, #tpu.memory_space<vmem>>, vector<128x512xf32>
    %c0_1 = arith.constant 0 : index
    %c0_2 = arith.constant 0 : index
    %1 = vector.load %arg0[%c0_1, %c0_2] : memref<64x16xf32, #tpu.memory_space<vmem>>, vector<64x16xf32>
    %c0_3 = arith.constant 0 : index
    %c0_4 = arith.constant 0 : index
    %2 = vector.load %arg1[%c0_3, %c0_4] : memref<16x512xf32, #tpu.memory_space<vmem>>, vector<16x512xf32>
    %cst = arith.constant dense<0.000000e+00> : vector<64x512xf32>
    %3 = tpu.matmul %1, %2, %cst {dimension_numbers = #tpu.dot_dimension_numbers<[1], [0], [0], [1], [0, 0, 1, 1], [], []>} : vector<64x16xf32>, vector<16x512xf32>, vector<64x512xf32> -> vector<64x512xf32>
    %c0_5 = arith.constant 0 : index
    %c0_6 = arith.constant 0 : index
    %4 = vector.load %arg3[%c0_5, %c0_6] : memref<1x512xf32, #tpu.memory_space<vmem>>, vector<1x512xf32>
    %5 = vector.broadcast %4 : vector<1x512xf32> to vector<64x512xf32>
    %6 = arith.addf %3, %5 : vector<64x512xf32>
    %cst_7 = arith.constant 0.000000e+00 : f32
    %7 = vector.broadcast %cst_7 : f32 to vector<8x128xf32>
    %cst_8 = arith.constant 0.000000e+00 : f32
    %8 = vector.broadcast %cst_8 : f32 to vector<8x128xf32>
    %9 = vector.extract_strided_slice %6 {offsets = [0, 0], sizes = [8, 512], strides = [1, 1]} : vector<64x512xf32> to vector<8x512xf32>
    %cst_9 = arith.constant dense<0.000000e+00> : vector<8x512xf32>
    %10 = tpu.matmul %7, %0, %cst_9 {dimension_numbers = #tpu.dot_dimension_numbers<[1], [0], [0], [1], [0, 0, 1, 1], [], []>} : vector<8x128xf32>, vector<128x512xf32>, vector<8x512xf32> -> vector<8x512xf32>
    %11 = arith.addf %9, %10 : vector<8x512xf32>
    %12 = vector.extract_strided_slice %11 {offsets = [0, 0], sizes = [8, 128], strides = [1, 1]} : vector<8x512xf32> to vector<8x128xf32>
    %13 = arith.negf %12 : vector<8x128xf32>
    %14 = math.exp %13 : vector<8x128xf32>
    %cst_10 = arith.constant 1.000000e+00 : f32
    %15 = vector.broadcast %cst_10 : f32 to vector<8x128xf32>
    %16 = arith.addf %15, %14 : vector<8x128xf32>
    %17 = arith.divf %15, %16 : vector<8x128xf32>
    %18 = vector.extract_strided_slice %11 {offsets = [0, 128], sizes = [8, 128], strides = [1, 1]} : vector<8x512xf32> to vector<8x128xf32>
    %19 = arith.negf %18 : vector<8x128xf32>
    %20 = math.exp %19 : vector<8x128xf32>
    %cst_11 = arith.constant 1.000000e+00 : f32
    %21 = vector.broadcast %cst_11 : f32 to vector<8x128xf32>
    %22 = arith.addf %21, %20 : vector<8x128xf32>
    %23 = arith.divf %21, %22 : vector<8x128xf32>
    %24 = vector.extract_strided_slice %11 {offsets = [0, 256], sizes = [8, 128], strides = [1, 1]} : vector<8x512xf32> to vector<8x128xf32>
    %25 = math.tanh %24 : vector<8x128xf32>
    %26 = vector.extract_strided_slice %11 {offsets = [0, 384], sizes = [8, 128], strides = [1, 1]} : vector<8x512xf32> to vector<8x128xf32>
    %27 = arith.negf %26 : vector<8x128xf32>
    %28 = math.exp %27 : vector<8x128xf32>
    %cst_12 = arith.constant 1.000000e+00 : f32
    %29 = vector.broadcast %cst_12 : f32 to vector<8x128xf32>
    %30 = arith.addf %29, %28 : vector<8x128xf32>
    %31 = arith.divf %29, %30 : vector<8x128xf32>
    %32 = arith.mulf %23, %8 : vector<8x128xf32>
    %33 = arith.mulf %17, %25 : vector<8x128xf32>
    %34 = arith.addf %32, %33 : vector<8x128xf32>
    %35 = math.tanh %34 : vector<8x128xf32>
    %36 = arith.mulf %31, %35 : vector<8x128xf32>
    %37 = vector.extract_strided_slice %6 {offsets = [8, 0], sizes = [8, 512], strides = [1, 1]} : vector<64x512xf32> to vector<8x512xf32>
    %cst_13 = arith.constant dense<0.000000e+00> : vector<8x512xf32>
    %38 = tpu.matmul %36, %0, %cst_13 {dimension_numbers = #tpu.dot_dimension_numbers<[1], [0], [0], [1], [0, 0, 1, 1], [], []>} : vector<8x128xf32>, vector<128x512xf32>, vector<8x512xf32> -> vector<8x512xf32>
    %39 = arith.addf %37, %38 : vector<8x512xf32>
    %40 = vector.extract_strided_slice %39 {offsets = [0, 0], sizes = [8, 128], strides = [1, 1]} : vector<8x512xf32> to vector<8x128xf32>
    %41 = arith.negf %40 : vector<8x128xf32>
    %42 = math.exp %41 : vector<8x128xf32>
    %cst_14 = arith.constant 1.000000e+00 : f32
    %43 = vector.broadcast %cst_14 : f32 to vector<8x128xf32>
    %44 = arith.addf %43, %42 : vector<8x128xf32>
    %45 = arith.divf %43, %44 : vector<8x128xf32>
    %46 = vector.extract_strided_slice %39 {offsets = [0, 128], sizes = [8, 128], strides = [1, 1]} : vector<8x512xf32> to vector<8x128xf32>
    %47 = arith.negf %46 : vector<8x128xf32>
    %48 = math.exp %47 : vector<8x128xf32>
    %cst_15 = arith.constant 1.000000e+00 : f32
    %49 = vector.broadcast %cst_15 : f32 to vector<8x128xf32>
    %50 = arith.addf %49, %48 : vector<8x128xf32>
    %51 = arith.divf %49, %50 : vector<8x128xf32>
    %52 = vector.extract_strided_slice %39 {offsets = [0, 256], sizes = [8, 128], strides = [1, 1]} : vector<8x512xf32> to vector<8x128xf32>
    %53 = math.tanh %52 : vector<8x128xf32>
    %54 = vector.extract_strided_slice %39 {offsets = [0, 384], sizes = [8, 128], strides = [1, 1]} : vector<8x512xf32> to vector<8x128xf32>
    %55 = arith.negf %54 : vector<8x128xf32>
    %56 = math.exp %55 : vector<8x128xf32>
    %cst_16 = arith.constant 1.000000e+00 : f32
    %57 = vector.broadcast %cst_16 : f32 to vector<8x128xf32>
    %58 = arith.addf %57, %56 : vector<8x128xf32>
    %59 = arith.divf %57, %58 : vector<8x128xf32>
    %60 = arith.mulf %51, %34 : vector<8x128xf32>
    %61 = arith.mulf %45, %53 : vector<8x128xf32>
    %62 = arith.addf %60, %61 : vector<8x128xf32>
    %63 = math.tanh %62 : vector<8x128xf32>
    %64 = arith.mulf %59, %63 : vector<8x128xf32>
    %65 = vector.extract_strided_slice %6 {offsets = [16, 0], sizes = [8, 512], strides = [1, 1]} : vector<64x512xf32> to vector<8x512xf32>
    %cst_17 = arith.constant dense<0.000000e+00> : vector<8x512xf32>
    %66 = tpu.matmul %64, %0, %cst_17 {dimension_numbers = #tpu.dot_dimension_numbers<[1], [0], [0], [1], [0, 0, 1, 1], [], []>} : vector<8x128xf32>, vector<128x512xf32>, vector<8x512xf32> -> vector<8x512xf32>
    %67 = arith.addf %65, %66 : vector<8x512xf32>
    %68 = vector.extract_strided_slice %67 {offsets = [0, 0], sizes = [8, 128], strides = [1, 1]} : vector<8x512xf32> to vector<8x128xf32>
    %69 = arith.negf %68 : vector<8x128xf32>
    %70 = math.exp %69 : vector<8x128xf32>
    %cst_18 = arith.constant 1.000000e+00 : f32
    %71 = vector.broadcast %cst_18 : f32 to vector<8x128xf32>
    %72 = arith.addf %71, %70 : vector<8x128xf32>
    %73 = arith.divf %71, %72 : vector<8x128xf32>
    %74 = vector.extract_strided_slice %67 {offsets = [0, 128], sizes = [8, 128], strides = [1, 1]} : vector<8x512xf32> to vector<8x128xf32>
    %75 = arith.negf %74 : vector<8x128xf32>
    %76 = math.exp %75 : vector<8x128xf32>
    %cst_19 = arith.constant 1.000000e+00 : f32
    %77 = vector.broadcast %cst_19 : f32 to vector<8x128xf32>
    %78 = arith.addf %77, %76 : vector<8x128xf32>
    %79 = arith.divf %77, %78 : vector<8x128xf32>
    %80 = vector.extract_strided_slice %67 {offsets = [0, 256], sizes = [8, 128], strides = [1, 1]} : vector<8x512xf32> to vector<8x128xf32>
    %81 = math.tanh %80 : vector<8x128xf32>
    %82 = vector.extract_strided_slice %67 {offsets = [0, 384], sizes = [8, 128], strides = [1, 1]} : vector<8x512xf32> to vector<8x128xf32>
    %83 = arith.negf %82 : vector<8x128xf32>
    %84 = math.exp %83 : vector<8x128xf32>
    %cst_20 = arith.constant 1.000000e+00 : f32
    %85 = vector.broadcast %cst_20 : f32 to vector<8x128xf32>
    %86 = arith.addf %85, %84 : vector<8x128xf32>
    %87 = arith.divf %85, %86 : vector<8x128xf32>
    %88 = arith.mulf %79, %62 : vector<8x128xf32>
    %89 = arith.mulf %73, %81 : vector<8x128xf32>
    %90 = arith.addf %88, %89 : vector<8x128xf32>
    %91 = math.tanh %90 : vector<8x128xf32>
    %92 = arith.mulf %87, %91 : vector<8x128xf32>
    %93 = vector.extract_strided_slice %6 {offsets = [24, 0], sizes = [8, 512], strides = [1, 1]} : vector<64x512xf32> to vector<8x512xf32>
    %cst_21 = arith.constant dense<0.000000e+00> : vector<8x512xf32>
    %94 = tpu.matmul %92, %0, %cst_21 {dimension_numbers = #tpu.dot_dimension_numbers<[1], [0], [0], [1], [0, 0, 1, 1], [], []>} : vector<8x128xf32>, vector<128x512xf32>, vector<8x512xf32> -> vector<8x512xf32>
    %95 = arith.addf %93, %94 : vector<8x512xf32>
    %96 = vector.extract_strided_slice %95 {offsets = [0, 0], sizes = [8, 128], strides = [1, 1]} : vector<8x512xf32> to vector<8x128xf32>
    %97 = arith.negf %96 : vector<8x128xf32>
    %98 = math.exp %97 : vector<8x128xf32>
    %cst_22 = arith.constant 1.000000e+00 : f32
    %99 = vector.broadcast %cst_22 : f32 to vector<8x128xf32>
    %100 = arith.addf %99, %98 : vector<8x128xf32>
    %101 = arith.divf %99, %100 : vector<8x128xf32>
    %102 = vector.extract_strided_slice %95 {offsets = [0, 128], sizes = [8, 128], strides = [1, 1]} : vector<8x512xf32> to vector<8x128xf32>
    %103 = arith.negf %102 : vector<8x128xf32>
    %104 = math.exp %103 : vector<8x128xf32>
    %cst_23 = arith.constant 1.000000e+00 : f32
    %105 = vector.broadcast %cst_23 : f32 to vector<8x128xf32>
    %106 = arith.addf %105, %104 : vector<8x128xf32>
    %107 = arith.divf %105, %106 : vector<8x128xf32>
    %108 = vector.extract_strided_slice %95 {offsets = [0, 256], sizes = [8, 128], strides = [1, 1]} : vector<8x512xf32> to vector<8x128xf32>
    %109 = math.tanh %108 : vector<8x128xf32>
    %110 = vector.extract_strided_slice %95 {offsets = [0, 384], sizes = [8, 128], strides = [1, 1]} : vector<8x512xf32> to vector<8x128xf32>
    %111 = arith.negf %110 : vector<8x128xf32>
    %112 = math.exp %111 : vector<8x128xf32>
    %cst_24 = arith.constant 1.000000e+00 : f32
    %113 = vector.broadcast %cst_24 : f32 to vector<8x128xf32>
    %114 = arith.addf %113, %112 : vector<8x128xf32>
    %115 = arith.divf %113, %114 : vector<8x128xf32>
    %116 = arith.mulf %107, %90 : vector<8x128xf32>
    %117 = arith.mulf %101, %109 : vector<8x128xf32>
    %118 = arith.addf %116, %117 : vector<8x128xf32>
    %119 = math.tanh %118 : vector<8x128xf32>
    %120 = arith.mulf %115, %119 : vector<8x128xf32>
    %121 = vector.extract_strided_slice %6 {offsets = [32, 0], sizes = [8, 512], strides = [1, 1]} : vector<64x512xf32> to vector<8x512xf32>
    %cst_25 = arith.constant dense<0.000000e+00> : vector<8x512xf32>
    %122 = tpu.matmul %120, %0, %cst_25 {dimension_numbers = #tpu.dot_dimension_numbers<[1], [0], [0], [1], [0, 0, 1, 1], [], []>} : vector<8x128xf32>, vector<128x512xf32>, vector<8x512xf32> -> vector<8x512xf32>
    %123 = arith.addf %121, %122 : vector<8x512xf32>
    %124 = vector.extract_strided_slice %123 {offsets = [0, 0], sizes = [8, 128], strides = [1, 1]} : vector<8x512xf32> to vector<8x128xf32>
    %125 = arith.negf %124 : vector<8x128xf32>
    %126 = math.exp %125 : vector<8x128xf32>
    %cst_26 = arith.constant 1.000000e+00 : f32
    %127 = vector.broadcast %cst_26 : f32 to vector<8x128xf32>
    %128 = arith.addf %127, %126 : vector<8x128xf32>
    %129 = arith.divf %127, %128 : vector<8x128xf32>
    %130 = vector.extract_strided_slice %123 {offsets = [0, 128], sizes = [8, 128], strides = [1, 1]} : vector<8x512xf32> to vector<8x128xf32>
    %131 = arith.negf %130 : vector<8x128xf32>
    %132 = math.exp %131 : vector<8x128xf32>
    %cst_27 = arith.constant 1.000000e+00 : f32
    %133 = vector.broadcast %cst_27 : f32 to vector<8x128xf32>
    %134 = arith.addf %133, %132 : vector<8x128xf32>
    %135 = arith.divf %133, %134 : vector<8x128xf32>
    %136 = vector.extract_strided_slice %123 {offsets = [0, 256], sizes = [8, 128], strides = [1, 1]} : vector<8x512xf32> to vector<8x128xf32>
    %137 = math.tanh %136 : vector<8x128xf32>
    %138 = vector.extract_strided_slice %123 {offsets = [0, 384], sizes = [8, 128], strides = [1, 1]} : vector<8x512xf32> to vector<8x128xf32>
    %139 = arith.negf %138 : vector<8x128xf32>
    %140 = math.exp %139 : vector<8x128xf32>
    %cst_28 = arith.constant 1.000000e+00 : f32
    %141 = vector.broadcast %cst_28 : f32 to vector<8x128xf32>
    %142 = arith.addf %141, %140 : vector<8x128xf32>
    %143 = arith.divf %141, %142 : vector<8x128xf32>
    %144 = arith.mulf %135, %118 : vector<8x128xf32>
    %145 = arith.mulf %129, %137 : vector<8x128xf32>
    %146 = arith.addf %144, %145 : vector<8x128xf32>
    %147 = math.tanh %146 : vector<8x128xf32>
    %148 = arith.mulf %143, %147 : vector<8x128xf32>
    %149 = vector.extract_strided_slice %6 {offsets = [40, 0], sizes = [8, 512], strides = [1, 1]} : vector<64x512xf32> to vector<8x512xf32>
    %cst_29 = arith.constant dense<0.000000e+00> : vector<8x512xf32>
    %150 = tpu.matmul %148, %0, %cst_29 {dimension_numbers = #tpu.dot_dimension_numbers<[1], [0], [0], [1], [0, 0, 1, 1], [], []>} : vector<8x128xf32>, vector<128x512xf32>, vector<8x512xf32> -> vector<8x512xf32>
    %151 = arith.addf %149, %150 : vector<8x512xf32>
    %152 = vector.extract_strided_slice %151 {offsets = [0, 0], sizes = [8, 128], strides = [1, 1]} : vector<8x512xf32> to vector<8x128xf32>
    %153 = arith.negf %152 : vector<8x128xf32>
    %154 = math.exp %153 : vector<8x128xf32>
    %cst_30 = arith.constant 1.000000e+00 : f32
    %155 = vector.broadcast %cst_30 : f32 to vector<8x128xf32>
    %156 = arith.addf %155, %154 : vector<8x128xf32>
    %157 = arith.divf %155, %156 : vector<8x128xf32>
    %158 = vector.extract_strided_slice %151 {offsets = [0, 128], sizes = [8, 128], strides = [1, 1]} : vector<8x512xf32> to vector<8x128xf32>
    %159 = arith.negf %158 : vector<8x128xf32>
    %160 = math.exp %159 : vector<8x128xf32>
    %cst_31 = arith.constant 1.000000e+00 : f32
    %161 = vector.broadcast %cst_31 : f32 to vector<8x128xf32>
    %162 = arith.addf %161, %160 : vector<8x128xf32>
    %163 = arith.divf %161, %162 : vector<8x128xf32>
    %164 = vector.extract_strided_slice %151 {offsets = [0, 256], sizes = [8, 128], strides = [1, 1]} : vector<8x512xf32> to vector<8x128xf32>
    %165 = math.tanh %164 : vector<8x128xf32>
    %166 = vector.extract_strided_slice %151 {offsets = [0, 384], sizes = [8, 128], strides = [1, 1]} : vector<8x512xf32> to vector<8x128xf32>
    %167 = arith.negf %166 : vector<8x128xf32>
    %168 = math.exp %167 : vector<8x128xf32>
    %cst_32 = arith.constant 1.000000e+00 : f32
    %169 = vector.broadcast %cst_32 : f32 to vector<8x128xf32>
    %170 = arith.addf %169, %168 : vector<8x128xf32>
    %171 = arith.divf %169, %170 : vector<8x128xf32>
    %172 = arith.mulf %163, %146 : vector<8x128xf32>
    %173 = arith.mulf %157, %165 : vector<8x128xf32>
    %174 = arith.addf %172, %173 : vector<8x128xf32>
    %175 = math.tanh %174 : vector<8x128xf32>
    %176 = arith.mulf %171, %175 : vector<8x128xf32>
    %177 = vector.extract_strided_slice %6 {offsets = [48, 0], sizes = [8, 512], strides = [1, 1]} : vector<64x512xf32> to vector<8x512xf32>
    %cst_33 = arith.constant dense<0.000000e+00> : vector<8x512xf32>
    %178 = tpu.matmul %176, %0, %cst_33 {dimension_numbers = #tpu.dot_dimension_numbers<[1], [0], [0], [1], [0, 0, 1, 1], [], []>} : vector<8x128xf32>, vector<128x512xf32>, vector<8x512xf32> -> vector<8x512xf32>
    %179 = arith.addf %177, %178 : vector<8x512xf32>
    %180 = vector.extract_strided_slice %179 {offsets = [0, 0], sizes = [8, 128], strides = [1, 1]} : vector<8x512xf32> to vector<8x128xf32>
    %181 = arith.negf %180 : vector<8x128xf32>
    %182 = math.exp %181 : vector<8x128xf32>
    %cst_34 = arith.constant 1.000000e+00 : f32
    %183 = vector.broadcast %cst_34 : f32 to vector<8x128xf32>
    %184 = arith.addf %183, %182 : vector<8x128xf32>
    %185 = arith.divf %183, %184 : vector<8x128xf32>
    %186 = vector.extract_strided_slice %179 {offsets = [0, 128], sizes = [8, 128], strides = [1, 1]} : vector<8x512xf32> to vector<8x128xf32>
    %187 = arith.negf %186 : vector<8x128xf32>
    %188 = math.exp %187 : vector<8x128xf32>
    %cst_35 = arith.constant 1.000000e+00 : f32
    %189 = vector.broadcast %cst_35 : f32 to vector<8x128xf32>
    %190 = arith.addf %189, %188 : vector<8x128xf32>
    %191 = arith.divf %189, %190 : vector<8x128xf32>
    %192 = vector.extract_strided_slice %179 {offsets = [0, 256], sizes = [8, 128], strides = [1, 1]} : vector<8x512xf32> to vector<8x128xf32>
    %193 = math.tanh %192 : vector<8x128xf32>
    %194 = vector.extract_strided_slice %179 {offsets = [0, 384], sizes = [8, 128], strides = [1, 1]} : vector<8x512xf32> to vector<8x128xf32>
    %195 = arith.negf %194 : vector<8x128xf32>
    %196 = math.exp %195 : vector<8x128xf32>
    %cst_36 = arith.constant 1.000000e+00 : f32
    %197 = vector.broadcast %cst_36 : f32 to vector<8x128xf32>
    %198 = arith.addf %197, %196 : vector<8x128xf32>
    %199 = arith.divf %197, %198 : vector<8x128xf32>
    %200 = arith.mulf %191, %174 : vector<8x128xf32>
    %201 = arith.mulf %185, %193 : vector<8x128xf32>
    %202 = arith.addf %200, %201 : vector<8x128xf32>
    %203 = math.tanh %202 : vector<8x128xf32>
    %204 = arith.mulf %199, %203 : vector<8x128xf32>
    %205 = vector.extract_strided_slice %6 {offsets = [56, 0], sizes = [8, 512], strides = [1, 1]} : vector<64x512xf32> to vector<8x512xf32>
    %cst_37 = arith.constant dense<0.000000e+00> : vector<8x512xf32>
    %206 = tpu.matmul %204, %0, %cst_37 {dimension_numbers = #tpu.dot_dimension_numbers<[1], [0], [0], [1], [0, 0, 1, 1], [], []>} : vector<8x128xf32>, vector<128x512xf32>, vector<8x512xf32> -> vector<8x512xf32>
    %207 = arith.addf %205, %206 : vector<8x512xf32>
    %208 = vector.extract_strided_slice %207 {offsets = [0, 0], sizes = [8, 128], strides = [1, 1]} : vector<8x512xf32> to vector<8x128xf32>
    %209 = arith.negf %208 : vector<8x128xf32>
    %210 = math.exp %209 : vector<8x128xf32>
    %cst_38 = arith.constant 1.000000e+00 : f32
    %211 = vector.broadcast %cst_38 : f32 to vector<8x128xf32>
    %212 = arith.addf %211, %210 : vector<8x128xf32>
    %213 = arith.divf %211, %212 : vector<8x128xf32>
    %214 = vector.extract_strided_slice %207 {offsets = [0, 128], sizes = [8, 128], strides = [1, 1]} : vector<8x512xf32> to vector<8x128xf32>
    %215 = arith.negf %214 : vector<8x128xf32>
    %216 = math.exp %215 : vector<8x128xf32>
    %cst_39 = arith.constant 1.000000e+00 : f32
    %217 = vector.broadcast %cst_39 : f32 to vector<8x128xf32>
    %218 = arith.addf %217, %216 : vector<8x128xf32>
    %219 = arith.divf %217, %218 : vector<8x128xf32>
    %220 = vector.extract_strided_slice %207 {offsets = [0, 256], sizes = [8, 128], strides = [1, 1]} : vector<8x512xf32> to vector<8x128xf32>
    %221 = math.tanh %220 : vector<8x128xf32>
    %222 = vector.extract_strided_slice %207 {offsets = [0, 384], sizes = [8, 128], strides = [1, 1]} : vector<8x512xf32> to vector<8x128xf32>
    %223 = arith.negf %222 : vector<8x128xf32>
    %224 = math.exp %223 : vector<8x128xf32>
    %cst_40 = arith.constant 1.000000e+00 : f32
    %225 = vector.broadcast %cst_40 : f32 to vector<8x128xf32>
    %226 = arith.addf %225, %224 : vector<8x128xf32>
    %227 = arith.divf %225, %226 : vector<8x128xf32>
    %228 = arith.mulf %219, %202 : vector<8x128xf32>
    %229 = arith.mulf %213, %221 : vector<8x128xf32>
    %230 = arith.addf %228, %229 : vector<8x128xf32>
    %231 = math.tanh %230 : vector<8x128xf32>
    %232 = arith.mulf %227, %231 : vector<8x128xf32>
    %c0_41 = arith.constant 0 : index
    %c0_42 = arith.constant 0 : index
    %233 = vector.load %arg4[%c0_41, %c0_42] : memref<128x128xf32, #tpu.memory_space<vmem>>, vector<128x128xf32>
    %cst_43 = arith.constant dense<0.000000e+00> : vector<8x128xf32>
    %234 = tpu.matmul %232, %233, %cst_43 {dimension_numbers = #tpu.dot_dimension_numbers<[1], [0], [0], [1], [0, 0, 1, 1], [], []>} : vector<8x128xf32>, vector<128x128xf32>, vector<8x128xf32> -> vector<8x128xf32>
    %c0_44 = arith.constant 0 : index
    %c0_45 = arith.constant 0 : index
    %235 = vector.load %arg5[%c0_44, %c0_45] : memref<1x128xf32, #tpu.memory_space<vmem>>, vector<1x128xf32>
    %236 = vector.broadcast %235 : vector<1x128xf32> to vector<8x128xf32>
    %237 = arith.addf %234, %236 : vector<8x128xf32>
    %c0_46 = arith.constant 0 : index
    %c0_47 = arith.constant 0 : index
    %238 = vector.load %arg6[%c0_46, %c0_47] : memref<8x128xf32, #tpu.memory_space<vmem>>, vector<8x128xf32>
    tpu.vector_store %arg6[%c0_46, %c0_47], %237 {strides = array<i32>} : memref<8x128xf32, #tpu.memory_space<vmem>>, vector<8x128xf32>,
    return
  }
}

</mosaic_0001>

<llo_original>
// kernel: multi_sensor_lstm_forward.1
$region0: #{multi_sensor_lstm_forward.1}
  #allocation0 [shape = 'u32[]', space=smem, size = 0x4, offset = 0x4, fixed_abs, tag = 'smem constant byte address 0x4 - core index']
  #allocation1 [shape = 'u32[72,128]{1,0:T(1,128)}', space=vmem, size = 0x9000, scoped, tag = 'internal scratch']
  %s0 = inlined_call_operand.vmem [shape: f32[64,16], index: 0, kind: input, shape index: {}]
  %s1 = inlined_call_operand.vmem [shape: f32[16,512], index: 1, kind: input, shape index: {}]
  %s2 = inlined_call_operand.hbm [shape: f32[128,512], index: 2, kind: input, shape index: {}]
  %s3 = inlined_call_operand.vmem [shape: f32[1,512], index: 3, kind: input, shape index: {}]
  %s4 = inlined_call_operand.vmem [shape: f32[128,128], index: 4, kind: input, shape index: {}]
  %s5 = inlined_call_operand.vmem [shape: f32[1,128], index: 5, kind: input, shape index: {}]
  %s6 = inlined_call_operand.vmem [shape: f32[8,128], index: 6, kind: output, shape index: {}]
  %s7 = sld [smem:[#allocation0]]
  $region38: #{multi_sensor_lstm_forward.1} parent=0
    _
  %s9 = ssub.s32 1, %s7
  %s10 = scalar_select 0, %s9, %s7
  $region1: #{multi_sensor_lstm_forward.1} parent=0
    #allocation2 [shape = 'u8[262144]{0}', space=vmem, size = 0x40000, scoped, tag = 'input window, operand 2, single buffered']
    #allocation3 [shape = 's32[1]{0}', space=sflag, size = 0x4, scoped, tag = 'scoped memory for multi_sensor_lstm_forward.1']
    %11 = vsyncpa [#allocation3], 0
    // Predicated region
    $region2: #{multi_sensor_lstm_forward.1} parent=1 // pred_check
      _
    $region3: #{multi_sensor_lstm_forward.1} parent=1 // pred_check_branch
      %13 = sbr.rel (0) target = $region5
    $region4: #{multi_sensor_lstm_forward.1} parent=1 // pred_region
      _
    $region5: #{multi_sensor_lstm_forward.1} parent=1 // pred_fallthru
      _
    // Predicated region
    $region6: #{multi_sensor_lstm_forward.1} parent=1 // pred_check
      _
    $region7: #{multi_sensor_lstm_forward.1} parent=1 // pred_check_branch
      %15 = sbr.rel (0) target = $region9
    $region8: #{multi_sensor_lstm_forward.1} parent=1 // pred_region
      _
    $region9: #{multi_sensor_lstm_forward.1} parent=1 // pred_fallthru
      _
    // Predicated region
    $region10: #{multi_sensor_lstm_forward.1} parent=1 // pred_check
      _
    $region11: #{multi_sensor_lstm_forward.1} parent=1 // pred_check_branch
      %17 = sbr.rel (0) target = $region13
    $region12: #{multi_sensor_lstm_forward.1} parent=1 // pred_region
      %19 = vsyncadd [#allocation3], 0
      %s20 = sshll.u32 %s2, 4
      %s21 = int_to_ptr.hbm [resolvable:$true] %s20
      %s22 = sshll.u32 [#allocation2], 4
      %s23 = int_to_ptr.vmem [resolvable:$true] %s22
      %28 = dma.hbm_to_vmem [thread:$0]  %s21, 8192, %s23, [#allocation3], 512, 512, 32
    $region13: #{multi_sensor_lstm_forward.1} parent=1 // pred_fallthru
      _
    // Predicated region
    $region14: #{multi_sensor_lstm_forward.1} parent=1 // pred_check
      _
    $region15: #{multi_sensor_lstm_forward.1} parent=1 // pred_check_branch
      %30 = sbr.rel (0) target = $region17
    $region16: #{multi_sensor_lstm_forward.1} parent=1 // pred_region
      _
    $region17: #{multi_sensor_lstm_forward.1} parent=1 // pred_fallthru
      _
    // Predicated region
    $region18: #{multi_sensor_lstm_forward.1} parent=1 // pred_check
      _
    $region19: #{multi_sensor_lstm_forward.1} parent=1 // pred_check_branch
      %32 = sbr.rel (0) target = $region21
    $region20: #{multi_sensor_lstm_forward.1} parent=1 // pred_region
      _
    $region21: #{multi_sensor_lstm_forward.1} parent=1 // pred_fallthru
      _
    // Predicated region
    $region22: #{multi_sensor_lstm_forward.1} parent=1 // pred_check
      _
    $region23: #{multi_sensor_lstm_forward.1} parent=1 // pred_check_branch
      %34 = sbr.rel (0) target = $region25
    $region24: #{multi_sensor_lstm_forward.1} parent=1 // pred_region
      _
    $region25: #{multi_sensor_lstm_forward.1} parent=1 // pred_fallthru
      _
    // Predicated region
    $region26: #{multi_sensor_lstm_forward.1} parent=1 // pred_check
      _
    $region27: #{multi_sensor_lstm_forward.1} parent=1 // pred_check_branch
      %36 = sbr.rel (0) target = $region29
    $region28: #{multi_sensor_lstm_forward.1} parent=1 // pred_region
      %38 = dma.done [#allocation3], 8192
    $region29: #{multi_sensor_lstm_forward.1} parent=1 // pred_fallthru
      _
    %v39 = vld [vmem:[#allocation2] sm:$0xff]
    %v40 = vld [vmem:[#allocation2 + $0x8] sm:$0xff]
    %v41 = vld [vmem:[#allocation2 + $0x10] sm:$0xff]
    %v42 = vld [vmem:[#allocation2 + $0x18] sm:$0xff]
    %v43 = vld [vmem:[#allocation2 + $0x20] sm:$0xff]
    %v44 = vld [vmem:[#allocation2 + $0x28] sm:$0xff]
    %v45 = vld [vmem:[#allocation2 + $0x30] sm:$0xff]
    %v46 = vld [vmem:[#allocation2 + $0x38] sm:$0xff]
    %v47 = vld [vmem:[#allocation2 + $0x40] sm:$0xff]
    %v48 = vld [vmem:[#allocation2 + $0x48] sm:$0xff]
    %v49 = vld [vmem:[#allocation2 + $0x50] sm:$0xff]
    %v50 = vld [vmem:[#allocation2 + $0x58] sm:$0xff]
    %v51 = vld [vmem:[#allocation2 + $0x60] sm:$0xff]
    %v52 = vld [vmem:[#allocation2 + $0x68] sm:$0xff]
    %v53 = vld [vmem:[#allocation2 + $0x70] sm:$0xff]
    %v54 = vld [vmem:[#allocation2 + $0x78] sm:$0xff]
    %v55 = vld [vmem:[#allocation2 + $0x80] sm:$0xff]
    %v56 = vld [vmem:[#allocation2 + $0x88] sm:$0xff]
    %v57 = vld [vmem:[#allocation2 + $0x90] sm:$0xff]
    %v58 = vld [vmem:[#allocation2 + $0x98] sm:$0xff]
    %v59 = vld [vmem:[#allocation2 + $0xa0] sm:$0xff]
    %v60 = vld [vmem:[#allocation2 + $0xa8] sm:$0xff]
    %v61 = vld [vmem:[#allocation2 + $0xb0] sm:$0xff]
    %v62 = vld [vmem:[#allocation2 + $0xb8] sm:$0xff]
    %v63 = vld [vmem:[#allocation2 + $0xc0] sm:$0xff]
    %v64 = vld [vmem:[#allocation2 + $0xc8] sm:$0xff]
    %v65 = vld [vmem:[#allocation2 + $0xd0] sm:$0xff]
    %v66 = vld [vmem:[#allocation2 + $0xd8] sm:$0xff]
    %v67 = vld [vmem:[#allocation2 + $0xe0] sm:$0xff]
    %v68 = vld [vmem:[#allocation2 + $0xe8] sm:$0xff]
    %v69 = vld [vmem:[#allocation2 + $0xf0] sm:$0xff]
    %v70 = vld [vmem:[#allocation2 + $0xf8] sm:$0xff]
    %v71 = vld [vmem:[#allocation2 + $0x100] sm:$0xff]
    %v72 = vld [vmem:[#allocation2 + $0x108] sm:$0xff]
    %v73 = vld [vmem:[#allocation2 + $0x110] sm:$0xff]
    %v74 = vld [vmem:[#allocation2 + $0x118] sm:$0xff]
    %v75 = vld [vmem:[#allocation2 + $0x120] sm:$0xff]
    %v76 = vld [vmem:[#allocation2 + $0x128] sm:$0xff]
    %v77 = vld [vmem:[#allocation2 + $0x130] sm:$0xff]
    %v78 = vld [vmem:[#allocation2 + $0x138] sm:$0xff]
    %v79 = vld [vmem:[#allocation2 + $0x140] sm:$0xff]
    %v80 = vld [vmem:[#allocation2 + $0x148] sm:$0xff]
    %v81 = vld [vmem:[#allocation2 + $0x150] sm:$0xff]
    %v82 = vld [vmem:[#allocation2 + $0x158] sm:$0xff]
    %v83 = vld [vmem:[#allocation2 + $0x160] sm:$0xff]
    %v84 = vld [vmem:[#allocation2 + $0x168] sm:$0xff]
    %v85 = vld [vmem:[#allocation2 + $0x170] sm:$0xff]
    %v86 = vld [vmem:[#allocation2 + $0x178] sm:$0xff]
    %v87 = vld [vmem:[#allocation2 + $0x180] sm:$0xff]
    %v88 = vld [vmem:[#allocation2 + $0x188] sm:$0xff]
    %v89 = vld [vmem:[#allocation2 + $0x190] sm:$0xff]
    %v90 = vld [vmem:[#allocation2 + $0x198] sm:$0xff]
    %v91 = vld [vmem:[#allocation2 + $0x1a0] sm:$0xff]
    %v92 = vld [vmem:[#allocation2 + $0x1a8] sm:$0xff]
    %v93 = vld [vmem:[#allocation2 + $0x1b0] sm:$0xff]
    %v94 = vld [vmem:[#allocation2 + $0x1b8] sm:$0xff]
    %v95 = vld [vmem:[#allocation2 + $0x1c0] sm:$0xff]
    %v96 = vld [vmem:[#allocation2 + $0x1c8] sm:$0xff]
    %v97 = vld [vmem:[#allocation2 + $0x1d0] sm:$0xff]
    %v98 = vld [vmem:[#allocation2 + $0x1d8] sm:$0xff]
    %v99 = vld [vmem:[#allocation2 + $0x1e0] sm:$0xff]
    %v100 = vld [vmem:[#allocation2 + $0x1e8] sm:$0xff]
    %v101 = vld [vmem:[#allocation2 + $0x1f0] sm:$0xff]
    %v102 = vld [vmem:[#allocation2 + $0x1f8] sm:$0xff]
    %v103 = vld [vmem:[%s0] sm:$0xff]
    %v104 = vld [vmem:[%s0 + $0x8] sm:$0xff]
    %v105 = vld [vmem:[%s0 + $0x10] sm:$0xff]
    %v106 = vld [vmem:[%s0 + $0x18] sm:$0xff]
    %v107 = vld [vmem:[%s0 + $0x20] sm:$0xff]
    %v108 = vld [vmem:[%s0 + $0x28] sm:$0xff]
    %v109 = vld [vmem:[%s0 + $0x30] sm:$0xff]
    %v110 = vld [vmem:[%s0 + $0x38] sm:$0xff]
    %v111 = vld [vmem:[%s1] sm:$0xff]
    %v112 = vld [vmem:[%s1 + $0x8] sm:$0xff]
    %v113 = vld [vmem:[%s1 + $0x10] sm:$0xff]
    %v114 = vld [vmem:[%s1 + $0x18] sm:$0xff]
    %v115 = vld [vmem:[%s1 + $0x20] sm:$0xff]
    %v116 = vld [vmem:[%s1 + $0x28] sm:$0xff]
    %v117 = vld [vmem:[%s1 + $0x30] sm:$0xff]
    %v118 = vld [vmem:[%s1 + $0x38] sm:$0xff]
    %v119 = vld [vmem:[%s3] sm:$0xf]
    %v121 = vperm.slane %v119, 0
    %v122 = vperm.slane %v119, 1
    %v123 = vperm.slane %v119, 2
    %v124 = vperm.slane %v119, 3
    %vm129 = vcmask 130048
    %v131 = vsel %vm129, %v103, 0
    %v134 = vsel %vm129, %v104, 0
    %v137 = vsel %vm129, %v105, 0
    %v140 = vsel %vm129, %v106, 0
    %v143 = vsel %vm129, %v107, 0
    %v146 = vsel %vm129, %v108, 0
    %v149 = vsel %vm129, %v109, 0
    %v152 = vsel %vm129, %v110, 0
    %154 = vmatpush.msra.mxu0 0.0
    %155 = vmatpush.msra.mxu0 0.0
    %156 = vmatpush.msra.mxu0 0.0
    %157 = vmatpush.msra.mxu0 0.0
    %158 = vmatpush.msra.mxu0 0.0
    %159 = vmatpush.msra.mxu0 0.0
    %160 = vmatpush.msra.mxu0 0.0
    %161 = vmatpush.msra.mxu0 0.0
    %162 = vmatpush.msra.mxu0 0.0
    %163 = vmatpush.msra.mxu0 0.0
    %164 = vmatpush.msra.mxu0 0.0
    %165 = vmatpush.msra.mxu0 0.0
    %166 = vmatpush.msra.mxu0 0.0
    %167 = vmatpush.msra.mxu0 0.0
    %168 = vmatpush.msra.mxu0 %v115
    %169 = vmatpush.msra.mxu0 %v111
    %170 = vmatmul.f32.gmra.mxu0 %v131
    %v171 = vpop.f32.mrf.mxu0
    %v172 = vadd.f32 %v121, %v171
    %173 = vmatmul.f32.gmra.mxu0 %v134
    %v174 = vpop.f32.mrf.mxu0
    %v175 = vadd.f32 %v121, %v174
    %176 = vmatmul.f32.gmra.mxu0 %v137
    %v177 = vpop.f32.mrf.mxu0
    %v178 = vadd.f32 %v121, %v177
    %179 = vmatmul.f32.gmra.mxu0 %v140
    %v180 = vpop.f32.mrf.mxu0
    %v181 = vadd.f32 %v121, %v180
    %182 = vmatmul.f32.gmra.mxu0 %v143
    %v183 = vpop.f32.mrf.mxu0
    %v184 = vadd.f32 %v121, %v183
    %185 = vmatmul.f32.gmra.mxu0 %v146
    %v186 = vpop.f32.mrf.mxu0
    %v187 = vadd.f32 %v121, %v186
    %188 = vmatmul.f32.gmra.mxu0 %v149
    %v189 = vpop.f32.mrf.mxu0
    %v190 = vadd.f32 %v121, %v189
    %191 = vmatmul.f32.gmra.mxu0 %v152
    %v192 = vpop.f32.mrf.mxu0
    %v193 = vadd.f32 %v121, %v192
    %194 = vdwg.mxu0
    %195 = vmatpush.msra.mxu0 0.0
    %196 = vmatpush.msra.mxu0 0.0
    %197 = vmatpush.msra.mxu0 0.0
    %198 = vmatpush.msra.mxu0 0.0
    %199 = vmatpush.msra.mxu0 0.0
    %200 = vmatpush.msra.mxu0 0.0
    %201 = vmatpush.msra.mxu0 0.0
    %202 = vmatpush.msra.mxu0 0.0
    %203 = vmatpush.msra.mxu0 0.0
    %204 = vmatpush.msra.mxu0 0.0
    %205 = vmatpush.msra.mxu0 0.0
    %206 = vmatpush.msra.mxu0 0.0
    %207 = vmatpush.msra.mxu0 0.0
    %208 = vmatpush.msra.mxu0 0.0
    %209 = vmatpush.msra.mxu0 %v116
    %210 = vmatpush.msra.mxu0 %v112
    %211 = vmatmul.f32.gmra.mxu0 %v131
    %v212 = vpop.f32.mrf.mxu0
    %v213 = vadd.f32 %v122, %v212
    %214 = vmatmul.f32.gmra.mxu0 %v134
    %v215 = vpop.f32.mrf.mxu0
    %v216 = vadd.f32 %v122, %v215
    %217 = vmatmul.f32.gmra.mxu0 %v137
    %v218 = vpop.f32.mrf.mxu0
    %v219 = vadd.f32 %v122, %v218
    %220 = vmatmul.f32.gmra.mxu0 %v140
    %v221 = vpop.f32.mrf.mxu0
    %v222 = vadd.f32 %v122, %v221
    %223 = vmatmul.f32.gmra.mxu0 %v143
    %v224 = vpop.f32.mrf.mxu0
    %v225 = vadd.f32 %v122, %v224
    %226 = vmatmul.f32.gmra.mxu0 %v146
    %v227 = vpop.f32.mrf.mxu0
    %v228 = vadd.f32 %v122, %v227
    %229 = vmatmul.f32.gmra.mxu0 %v149
    %v230 = vpop.f32.mrf.mxu0
    %v231 = vadd.f32 %v122, %v230
    %232 = vmatmul.f32.gmra.mxu0 %v152
    %v233 = vpop.f32.mrf.mxu0
    %v234 = vadd.f32 %v122, %v233
    %235 = vdwg.mxu0
    %236 = vmatpush.msra.mxu0 0.0
    %237 = vmatpush.msra.mxu0 0.0
    %238 = vmatpush.msra.mxu0 0.0
    %239 = vmatpush.msra.mxu0 0.0
    %240 = vmatpush.msra.mxu0 0.0
    %241 = vmatpush.msra.mxu0 0.0
    %242 = vmatpush.msra.mxu0 0.0
    %243 = vmatpush.msra.mxu0 0.0
    %244 = vmatpush.msra.mxu0 0.0
    %245 = vmatpush.msra.mxu0 0.0
    %246 = vmatpush.msra.mxu0 0.0
    %247 = vmatpush.msra.mxu0 0.0
    %248 = vmatpush.msra.mxu0 0.0
    %249 = vmatpush.msra.mxu0 0.0
    %250 = vmatpush.msra.mxu0 %v117
    %251 = vmatpush.msra.mxu0 %v113
    %252 = vmatmul.f32.gmra.mxu0 %v131
    %v253 = vpop.f32.mrf.mxu0
    %v254 = vadd.f32 %v123, %v253
    %255 = vmatmul.f32.gmra.mxu0 %v134
    %v256 = vpop.f32.mrf.mxu0
    %v257 = vadd.f32 %v123, %v256
    %258 = vmatmul.f32.gmra.mxu0 %v137
    %v259 = vpop.f32.mrf.mxu0
    %v260 = vadd.f32 %v123, %v259
    %261 = vmatmul.f32.gmra.mxu0 %v140
    %v262 = vpop.f32.mrf.mxu0
    %v263 = vadd.f32 %v123, %v262
    %264 = vmatmul.f32.gmra.mxu0 %v143
    %v265 = vpop.f32.mrf.mxu0
    %v266 = vadd.f32 %v123, %v265
    %267 = vmatmul.f32.gmra.mxu0 %v146
    %v268 = vpop.f32.mrf.mxu0
    %v269 = vadd.f32 %v123, %v268
    %270 = vmatmul.f32.gmra.mxu0 %v149
    %v271 = vpop.f32.mrf.mxu0
    %v272 = vadd.f32 %v123, %v271
    %273 = vmatmul.f32.gmra.mxu0 %v152
    %v274 = vpop.f32.mrf.mxu0
    %v275 = vadd.f32 %v123, %v274
    %276 = vdwg.mxu0
    %277 = vmatpush.msra.mxu0 0.0
    %278 = vmatpush.msra.mxu0 0.0
    %279 = vmatpush.msra.mxu0 0.0
    %280 = vmatpush.msra.mxu0 0.0
    %281 = vmatpush.msra.mxu0 0.0
    %282 = vmatpush.msra.mxu0 0.0
    %283 = vmatpush.msra.mxu0 0.0
    %284 = vmatpush.msra.mxu0 0.0
    %285 = vmatpush.msra.mxu0 0.0
    %286 = vmatpush.msra.mxu0 0.0
    %287 = vmatpush.msra.mxu0 0.0
    %288 = vmatpush.msra.mxu0 0.0
    %289 = vmatpush.msra.mxu0 0.0
    %290 = vmatpush.msra.mxu0 0.0
    %291 = vmatpush.msra.mxu0 %v118
    %292 = vmatpush.msra.mxu0 %v114
    %293 = vmatmul.f32.gmra.mxu0 %v131
    %v294 = vpop.f32.mrf.mxu0
    %v295 = vadd.f32 %v124, %v294
    %296 = vmatmul.f32.gmra.mxu0 %v134
    %v297 = vpop.f32.mrf.mxu0
    %v298 = vadd.f32 %v124, %v297
    %299 = vmatmul.f32.gmra.mxu0 %v137
    %v300 = vpop.f32.mrf.mxu0
    %v301 = vadd.f32 %v124, %v300
    %302 = vmatmul.f32.gmra.mxu0 %v140
    %v303 = vpop.f32.mrf.mxu0
    %v304 = vadd.f32 %v124, %v303
    %305 = vmatmul.f32.gmra.mxu0 %v143
    %v306 = vpop.f32.mrf.mxu0
    %v307 = vadd.f32 %v124, %v306
    %308 = vmatmul.f32.gmra.mxu0 %v146
    %v309 = vpop.f32.mrf.mxu0
    %v310 = vadd.f32 %v124, %v309
    %311 = vmatmul.f32.gmra.mxu0 %v149
    %v312 = vpop.f32.mrf.mxu0
    %v313 = vadd.f32 %v124, %v312
    %314 = vmatmul.f32.gmra.mxu0 %v152
    %v315 = vpop.f32.mrf.mxu0
    %v316 = vadd.f32 %v124, %v315
    %317 = vdwg.mxu0
    %318 = vmatpush.msra.mxu0 %v99
    %319 = vmatpush.msra.mxu0 %v95
    %320 = vmatpush.msra.mxu0 %v91
    %321 = vmatpush.msra.mxu0 %v87
    %322 = vmatpush.msra.mxu0 %v83
    %323 = vmatpush.msra.mxu0 %v79
    %324 = vmatpush.msra.mxu0 %v75
    %325 = vmatpush.msra.mxu0 %v71
    %326 = vmatpush.msra.mxu0 %v67
    %327 = vmatpush.msra.mxu0 %v63
    %328 = vmatpush.msra.mxu0 %v59
    %329 = vmatpush.msra.mxu0 %v55
    %330 = vmatpush.msra.mxu0 %v51
    %331 = vmatpush.msra.mxu0 %v47
    %332 = vmatpush.msra.mxu0 %v43
    %333 = vmatpush.msra.mxu0 %v39
    %334 = vmatmul.f32.gmra.mxu0 0.0
    %v335 = vpop.f32.mrf.mxu0
    %v336 = vadd.f32 0.0, %v335
    %337 = vdwg.mxu0
    %338 = vmatpush.msra.mxu0 %v100
    %339 = vmatpush.msra.mxu0 %v96
    %340 = vmatpush.msra.mxu0 %v92
    %341 = vmatpush.msra.mxu0 %v88
    %342 = vmatpush.msra.mxu0 %v84
    %343 = vmatpush.msra.mxu0 %v80
    %344 = vmatpush.msra.mxu0 %v76
    %345 = vmatpush.msra.mxu0 %v72
    %346 = vmatpush.msra.mxu0 %v68
    %347 = vmatpush.msra.mxu0 %v64
    %348 = vmatpush.msra.mxu0 %v60
    %349 = vmatpush.msra.mxu0 %v56
    %350 = vmatpush.msra.mxu0 %v52
    %351 = vmatpush.msra.mxu0 %v48
    %352 = vmatpush.msra.mxu0 %v44
    %353 = vmatpush.msra.mxu0 %v40
    %354 = vmatmul.f32.gmra.mxu0 0.0
    %v355 = vpop.f32.mrf.mxu0
    %v356 = vadd.f32 0.0, %v355
    %357 = vdwg.mxu0
    %358 = vmatpush.msra.mxu0 %v101
    %359 = vmatpush.msra.mxu0 %v97
    %360 = vmatpush.msra.mxu0 %v93
    %361 = vmatpush.msra.mxu0 %v89
    %362 = vmatpush.msra.mxu0 %v85
    %363 = vmatpush.msra.mxu0 %v81
    %364 = vmatpush.msra.mxu0 %v77
    %365 = vmatpush.msra.mxu0 %v73
    %366 = vmatpush.msra.mxu0 %v69
    %367 = vmatpush.msra.mxu0 %v65
    %368 = vmatpush.msra.mxu0 %v61
    %369 = vmatpush.msra.mxu0 %v57
    %370 = vmatpush.msra.mxu0 %v53
    %371 = vmatpush.msra.mxu0 %v49
    %372 = vmatpush.msra.mxu0 %v45
    %373 = vmatpush.msra.mxu0 %v41
    %374 = vmatmul.f32.gmra.mxu0 0.0
    %v375 = vpop.f32.mrf.mxu0
    %v376 = vadd.f32 0.0, %v375
    %377 = vdwg.mxu0
    %378 = vmatpush.msra.mxu0 %v102
    %379 = vmatpush.msra.mxu0 %v98
    %380 = vmatpush.msra.mxu0 %v94
    %381 = vmatpush.msra.mxu0 %v90
    %382 = vmatpush.msra.mxu0 %v86
    %383 = vmatpush.msra.mxu0 %v82
    %384 = vmatpush.msra.mxu0 %v78
    %385 = vmatpush.msra.mxu0 %v74
    %386 = vmatpush.msra.mxu0 %v70
    %387 = vmatpush.msra.mxu0 %v66
    %388 = vmatpush.msra.mxu0 %v62
    %389 = vmatpush.msra.mxu0 %v58
    %390 = vmatpush.msra.mxu0 %v54
    %391 = vmatpush.msra.mxu0 %v50
    %392 = vmatpush.msra.mxu0 %v46
    %393 = vmatpush.msra.mxu0 %v42
    %394 = vmatmul.f32.gmra.mxu0 0.0
    %v395 = vpop.f32.mrf.mxu0
    %v396 = vadd.f32 0.0, %v395
    %397 = vdwg.mxu0
    %v398 = vadd.f32 %v172, %v336
    %v399 = vadd.f32 %v213, %v356
    %v400 = vadd.f32 %v254, %v376
    %v401 = vadd.f32 %v295, %v396
    %v402 = vxor.u32 %v398, 2147483648
    %v403 = vmul.f32 %v402, 1.442695
    %v404 = vpow.pop %v403
    %v405 = vadd.f32 %v404, 1.0
    %v406 = vrcp.pop %v405
    %v407 = vmul.f32 %v405, %v406
    %v408 = vsub.f32 1.0, %v407
    %v409 = vmul.f32 %v406, %v408
    %v410 = vadd.f32 %v406, %v409
    %vm411 = vweird.f32 %v405
    %vm412 = vweird.f32 %v406
    %vm413 = vmor %vm411, %vm412
    %v414 = vsel %vm413, %v406, %v410
    %v415 = vand.u32 2147483647, %v405
    %vm416 = vcmp.eq.f32.partialorder %v415, 8.507059e+37
    %v417 = vand.u32 %v405, 2147483648
    %v418 = vor.u32 1.1754944e-38, %v417
    %v419 = vsel %vm416, %v418, %v414
    %v420 = vmul.f32 1.0, %v419
    %v421 = vxor.u32 %v399, 2147483648
    %v422 = vmul.f32 %v421, 1.442695
    %v423 = vpow.pop %v422
    %v424 = vadd.f32 %v423, 1.0
    %v425 = vrcp.pop %v424
    %v426 = vmul.f32 %v424, %v425
    %v427 = vsub.f32 1.0, %v426
    %v428 = vmul.f32 %v425, %v427
    %v429 = vadd.f32 %v425, %v428
    %vm430 = vweird.f32 %v424
    %vm431 = vweird.f32 %v425
    %vm432 = vmor %vm430, %vm431
    %v433 = vsel %vm432, %v425, %v429
    %v434 = vand.u32 2147483647, %v424
    %vm435 = vcmp.eq.f32.partialorder %v434, 8.507059e+37
    %v436 = vand.u32 %v424, 2147483648
    %v437 = vor.u32 1.1754944e-38, %v436
    %v438 = vsel %vm435, %v437, %v433
    %v439 = vmul.f32 1.0, %v438
    %v440 = vtanh.pop %v400
    %v441 = vxor.u32 %v401, 2147483648
    %v442 = vmul.f32 %v441, 1.442695
    %v443 = vpow.pop %v442
    %v444 = vadd.f32 %v443, 1.0
    %v445 = vrcp.pop %v444
    %v446 = vmul.f32 %v444, %v445
    %v447 = vsub.f32 1.0, %v446
    %v448 = vmul.f32 %v445, %v447
    %v449 = vadd.f32 %v445, %v448
    %vm450 = vweird.f32 %v444
    %vm451 = vweird.f32 %v445
    %vm452 = vmor %vm450, %vm451
    %v453 = vsel %vm452, %v445, %v449
    %v454 = vand.u32 2147483647, %v444
    %vm455 = vcmp.eq.f32.partialorder %v454, 8.507059e+37
    %v456 = vand.u32 %v444, 2147483648
    %v457 = vor.u32 1.1754944e-38, %v456
    %v458 = vsel %vm455, %v457, %v453
    %v459 = vmul.f32 1.0, %v458
    %v460 = vmul.f32 %v439, 0.0
    %v461 = vmul.f32 %v420, %v440
    %v462 = vadd.f32 %v460, %v461
    %v463 = vtanh.pop %v462
    %v464 = vmul.f32 %v459, %v463
    %465 = vmatpush.msra.mxu0 %v99
    %466 = vmatpush.msra.mxu0 %v95
    %467 = vmatpush.msra.mxu0 %v91
    %468 = vmatpush.msra.mxu0 %v87
    %469 = vmatpush.msra.mxu0 %v83
    %470 = vmatpush.msra.mxu0 %v79
    %471 = vmatpush.msra.mxu0 %v75
    %472 = vmatpush.msra.mxu0 %v71
    %473 = vmatpush.msra.mxu0 %v67
    %474 = vmatpush.msra.mxu0 %v63
    %475 = vmatpush.msra.mxu0 %v59
    %476 = vmatpush.msra.mxu0 %v55
    %477 = vmatpush.msra.mxu0 %v51
    %478 = vmatpush.msra.mxu0 %v47
    %479 = vmatpush.msra.mxu0 %v43
    %480 = vmatpush.msra.mxu0 %v39
    %481 = vmatmul.f32.gmra.mxu0 %v464
    %v482 = vpop.f32.mrf.mxu0
    %v483 = vadd.f32 0.0, %v482
    %484 = vdwg.mxu0
    %485 = vmatpush.msra.mxu0 %v100
    %486 = vmatpush.msra.mxu0 %v96
    %487 = vmatpush.msra.mxu0 %v92
    %488 = vmatpush.msra.mxu0 %v88
    %489 = vmatpush.msra.mxu0 %v84
    %490 = vmatpush.msra.mxu0 %v80
    %491 = vmatpush.msra.mxu0 %v76
    %492 = vmatpush.msra.mxu0 %v72
    %493 = vmatpush.msra.mxu0 %v68
    %494 = vmatpush.msra.mxu0 %v64
    %495 = vmatpush.msra.mxu0 %v60
    %496 = vmatpush.msra.mxu0 %v56
    %497 = vmatpush.msra.mxu0 %v52
    %498 = vmatpush.msra.mxu0 %v48
    %499 = vmatpush.msra.mxu0 %v44
    %500 = vmatpush.msra.mxu0 %v40
    %501 = vmatmul.f32.gmra.mxu0 %v464
    %v502 = vpop.f32.mrf.mxu0
    %v503 = vadd.f32 0.0, %v502
    %504 = vdwg.mxu0
    %505 = vmatpush.msra.mxu0 %v101
    %506 = vmatpush.msra.mxu0 %v97
    %507 = vmatpush.msra.mxu0 %v93
    %508 = vmatpush.msra.mxu0 %v89
    %509 = vmatpush.msra.mxu0 %v85
    %510 = vmatpush.msra.mxu0 %v81
    %511 = vmatpush.msra.mxu0 %v77
    %512 = vmatpush.msra.mxu0 %v73
    %513 = vmatpush.msra.mxu0 %v69
    %514 = vmatpush.msra.mxu0 %v65
    %515 = vmatpush.msra.mxu0 %v61
    %516 = vmatpush.msra.mxu0 %v57
    %517 = vmatpush.msra.mxu0 %v53
    %518 = vmatpush.msra.mxu0 %v49
    %519 = vmatpush.msra.mxu0 %v45
    %520 = vmatpush.msra.mxu0 %v41
    %521 = vmatmul.f32.gmra.mxu0 %v464
    %v522 = vpop.f32.mrf.mxu0
    %v523 = vadd.f32 0.0, %v522
    %524 = vdwg.mxu0
    %525 = vmatpush.msra.mxu0 %v102
    %526 = vmatpush.msra.mxu0 %v98
    %527 = vmatpush.msra.mxu0 %v94
    %528 = vmatpush.msra.mxu0 %v90
    %529 = vmatpush.msra.mxu0 %v86
    %530 = vmatpush.msra.mxu0 %v82
    %531 = vmatpush.msra.mxu0 %v78
    %532 = vmatpush.msra.mxu0 %v74
    %533 = vmatpush.msra.mxu0 %v70
    %534 = vmatpush.msra.mxu0 %v66
    %535 = vmatpush.msra.mxu0 %v62
    %536 = vmatpush.msra.mxu0 %v58
    %537 = vmatpush.msra.mxu0 %v54
    %538 = vmatpush.msra.mxu0 %v50
    %539 = vmatpush.msra.mxu0 %v46
    %540 = vmatpush.msra.mxu0 %v42
    %541 = vmatmul.f32.gmra.mxu0 %v464
    %v542 = vpop.f32.mrf.mxu0
    %v543 = vadd.f32 0.0, %v542
    %544 = vdwg.mxu0
    %v545 = vadd.f32 %v175, %v483
    %v546 = vadd.f32 %v216, %v503
    %v547 = vadd.f32 %v257, %v523
    %v548 = vadd.f32 %v298, %v543
    %v549 = vxor.u32 %v545, 2147483648
    %v550 = vmul.f32 %v549, 1.442695
    %v551 = vpow.pop %v550
    %v552 = vadd.f32 %v551, 1.0
    %v553 = vrcp.pop %v552
    %v554 = vmul.f32 %v552, %v553
    %v555 = vsub.f32 1.0, %v554
    %v556 = vmul.f32 %v553, %v555
    %v557 = vadd.f32 %v553, %v556
    %vm558 = vweird.f32 %v552
    %vm559 = vweird.f32 %v553
    %vm560 = vmor %vm558, %vm559
    %v561 = vsel %vm560, %v553, %v557
    %v562 = vand.u32 2147483647, %v552
    %vm563 = vcmp.eq.f32.partialorder %v562, 8.507059e+37
    %v564 = vand.u32 %v552, 2147483648
    %v565 = vor.u32 1.1754944e-38, %v564
    %v566 = vsel %vm563, %v565, %v561
    %v567 = vmul.f32 1.0, %v566
    %v568 = vxor.u32 %v546, 2147483648
    %v569 = vmul.f32 %v568, 1.442695
    %v570 = vpow.pop %v569
    %v571 = vadd.f32 %v570, 1.0
    %v572 = vrcp.pop %v571
    %v573 = vmul.f32 %v571, %v572
    %v574 = vsub.f32 1.0, %v573
    %v575 = vmul.f32 %v572, %v574
    %v576 = vadd.f32 %v572, %v575
    %vm577 = vweird.f32 %v571
    %vm578 = vweird.f32 %v572
    %vm579 = vmor %vm577, %vm578
    %v580 = vsel %vm579, %v572, %v576
    %v581 = vand.u32 2147483647, %v571
    %vm582 = vcmp.eq.f32.partialorder %v581, 8.507059e+37
    %v583 = vand.u32 %v571, 2147483648
    %v584 = vor.u32 1.1754944e-38, %v583
    %v585 = vsel %vm582, %v584, %v580
    %v586 = vmul.f32 1.0, %v585
    %v587 = vtanh.pop %v547
    %v588 = vxor.u32 %v548, 2147483648
    %v589 = vmul.f32 %v588, 1.442695
    %v590 = vpow.pop %v589
    %v591 = vadd.f32 %v590, 1.0
    %v592 = vrcp.pop %v591
    %v593 = vmul.f32 %v591, %v592
    %v594 = vsub.f32 1.0, %v593
    %v595 = vmul.f32 %v592, %v594
    %v596 = vadd.f32 %v592, %v595
    %vm597 = vweird.f32 %v591
    %vm598 = vweird.f32 %v592
    %vm599 = vmor %vm597, %vm598
    %v600 = vsel %vm599, %v592, %v596
    %v601 = vand.u32 2147483647, %v591
    %vm602 = vcmp.eq.f32.partialorder %v601, 8.507059e+37
    %v603 = vand.u32 %v591, 2147483648
    %v604 = vor.u32 1.1754944e-38, %v603
    %v605 = vsel %vm602, %v604, %v600
    %v606 = vmul.f32 1.0, %v605
    %v607 = vmul.f32 %v586, %v462
    %v608 = vmul.f32 %v567, %v587
    %v609 = vadd.f32 %v607, %v608
    %v610 = vtanh.pop %v609
    %v611 = vmul.f32 %v606, %v610
    %612 = vmatpush.msra.mxu0 %v99
    %613 = vmatpush.msra.mxu0 %v95
    %614 = vmatpush.msra.mxu0 %v91
    %615 = vmatpush.msra.mxu0 %v87
    %616 = vmatpush.msra.mxu0 %v83
    %617 = vmatpush.msra.mxu0 %v79
    %618 = vmatpush.msra.mxu0 %v75
    %619 = vmatpush.msra.mxu0 %v71
    %620 = vmatpush.msra.mxu0 %v67
    %621 = vmatpush.msra.mxu0 %v63
    %622 = vmatpush.msra.mxu0 %v59
    %623 = vmatpush.msra.mxu0 %v55
    %624 = vmatpush.msra.mxu0 %v51
    %625 = vmatpush.msra.mxu0 %v47
    %626 = vmatpush.msra.mxu0 %v43
    %627 = vmatpush.msra.mxu0 %v39
    %628 = vmatmul.f32.gmra.mxu0 %v611
    %v629 = vpop.f32.mrf.mxu0
    %v630 = vadd.f32 0.0, %v629
    %631 = vdwg.mxu0
    %632 = vmatpush.msra.mxu0 %v100
    %633 = vmatpush.msra.mxu0 %v96
    %634 = vmatpush.msra.mxu0 %v92
    %635 = vmatpush.msra.mxu0 %v88
    %636 = vmatpush.msra.mxu0 %v84
    %637 = vmatpush.msra.mxu0 %v80
    %638 = vmatpush.msra.mxu0 %v76
    %639 = vmatpush.msra.mxu0 %v72
    %640 = vmatpush.msra.mxu0 %v68
    %641 = vmatpush.msra.mxu0 %v64
    %642 = vmatpush.msra.mxu0 %v60
    %643 = vmatpush.msra.mxu0 %v56
    %644 = vmatpush.msra.mxu0 %v52
    %645 = vmatpush.msra.mxu0 %v48
    %646 = vmatpush.msra.mxu0 %v44
    %647 = vmatpush.msra.mxu0 %v40
    %648 = vmatmul.f32.gmra.mxu0 %v611
    %v649 = vpop.f32.mrf.mxu0
    %v650 = vadd.f32 0.0, %v649
    %651 = vdwg.mxu0
    %652 = vmatpush.msra.mxu0 %v101
    %653 = vmatpush.msra.mxu0 %v97
    %654 = vmatpush.msra.mxu0 %v93
    %655 = vmatpush.msra.mxu0 %v89
    %656 = vmatpush.msra.mxu0 %v85
    %657 = vmatpush.msra.mxu0 %v81
    %658 = vmatpush.msra.mxu0 %v77
    %659 = vmatpush.msra.mxu0 %v73
    %660 = vmatpush.msra.mxu0 %v69
    %661 = vmatpush.msra.mxu0 %v65
    %662 = vmatpush.msra.mxu0 %v61
    %663 = vmatpush.msra.mxu0 %v57
    %664 = vmatpush.msra.mxu0 %v53
    %665 = vmatpush.msra.mxu0 %v49
    %666 = vmatpush.msra.mxu0 %v45
    %667 = vmatpush.msra.mxu0 %v41
    %668 = vmatmul.f32.gmra.mxu0 %v611
    %v669 = vpop.f32.mrf.mxu0
    %v670 = vadd.f32 0.0, %v669
    %671 = vdwg.mxu0
    %672 = vmatpush.msra.mxu0 %v102
    %673 = vmatpush.msra.mxu0 %v98
    %674 = vmatpush.msra.mxu0 %v94
    %675 = vmatpush.msra.mxu0 %v90
    %676 = vmatpush.msra.mxu0 %v86
    %677 = vmatpush.msra.mxu0 %v82
    %678 = vmatpush.msra.mxu0 %v78
    %679 = vmatpush.msra.mxu0 %v74
    %680 = vmatpush.msra.mxu0 %v70
    %681 = vmatpush.msra.mxu0 %v66
    %682 = vmatpush.msra.mxu0 %v62
    %683 = vmatpush.msra.mxu0 %v58
    %684 = vmatpush.msra.mxu0 %v54
    %685 = vmatpush.msra.mxu0 %v50
    %686 = vmatpush.msra.mxu0 %v46
    %687 = vmatpush.msra.mxu0 %v42
    %688 = vmatmul.f32.gmra.mxu0 %v611
    %v689 = vpop.f32.mrf.mxu0
    %v690 = vadd.f32 0.0, %v689
    %691 = vdwg.mxu0
    %v692 = vadd.f32 %v178, %v630
    %v693 = vadd.f32 %v219, %v650
    %v694 = vadd.f32 %v260, %v670
    %v695 = vadd.f32 %v301, %v690
    %v696 = vxor.u32 %v692, 2147483648
    %v697 = vmul.f32 %v696, 1.442695
    %v698 = vpow.pop %v697
    %v699 = vadd.f32 %v698, 1.0
    %v700 = vrcp.pop %v699
    %v701 = vmul.f32 %v699, %v700
    %v702 = vsub.f32 1.0, %v701
    %v703 = vmul.f32 %v700, %v702
    %v704 = vadd.f32 %v700, %v703
    %vm705 = vweird.f32 %v699
    %vm706 = vweird.f32 %v700
    %vm707 = vmor %vm705, %vm706
    %v708 = vsel %vm707, %v700, %v704
    %v709 = vand.u32 2147483647, %v699
    %vm710 = vcmp.eq.f32.partialorder %v709, 8.507059e+37
    %v711 = vand.u32 %v699, 2147483648
    %v712 = vor.u32 1.1754944e-38, %v711
    %v713 = vsel %vm710, %v712, %v708
    %v714 = vmul.f32 1.0, %v713
    %v715 = vxor.u32 %v693, 2147483648
    %v716 = vmul.f32 %v715, 1.442695
    %v717 = vpow.pop %v716
    %v718 = vadd.f32 %v717, 1.0
    %v719 = vrcp.pop %v718
    %v720 = vmul.f32 %v718, %v719
    %v721 = vsub.f32 1.0, %v720
    %v722 = vmul.f32 %v719, %v721
    %v723 = vadd.f32 %v719, %v722
    %vm724 = vweird.f32 %v718
    %vm725 = vweird.f32 %v719
    %vm726 = vmor %vm724, %vm725
    %v727 = vsel %vm726, %v719, %v723
    %v728 = vand.u32 2147483647, %v718
    %vm729 = vcmp.eq.f32.partialorder %v728, 8.507059e+37
    %v730 = vand.u32 %v718, 2147483648
    %v731 = vor.u32 1.1754944e-38, %v730
    %v732 = vsel %vm729, %v731, %v727
    %v733 = vmul.f32 1.0, %v732
    %v734 = vtanh.pop %v694
    %v735 = vxor.u32 %v695, 2147483648
    %v736 = vmul.f32 %v735, 1.442695
    %v737 = vpow.pop %v736
    %v738 = vadd.f32 %v737, 1.0
    %v739 = vrcp.pop %v738
    %v740 = vmul.f32 %v738, %v739
    %v741 = vsub.f32 1.0, %v740
    %v742 = vmul.f32 %v739, %v741
    %v743 = vadd.f32 %v739, %v742
    %vm744 = vweird.f32 %v738
    %vm745 = vweird.f32 %v739
    %vm746 = vmor %vm744, %vm745
    %v747 = vsel %vm746, %v739, %v743
    %v748 = vand.u32 2147483647, %v738
    %vm749 = vcmp.eq.f32.partialorder %v748, 8.507059e+37
    %v750 = vand.u32 %v738, 2147483648
    %v751 = vor.u32 1.1754944e-38, %v750
    %v752 = vsel %vm749, %v751, %v747
    %v753 = vmul.f32 1.0, %v752
    %v754 = vmul.f32 %v733, %v609
    %v755 = vmul.f32 %v714, %v734
    %v756 = vadd.f32 %v754, %v755
    %v757 = vtanh.pop %v756
    %v758 = vmul.f32 %v753, %v757
    %759 = vmatpush.msra.mxu0 %v99
    %760 = vmatpush.msra.mxu0 %v95
    %761 = vmatpush.msra.mxu0 %v91
    %762 = vmatpush.msra.mxu0 %v87
    %763 = vmatpush.msra.mxu0 %v83
    %764 = vmatpush.msra.mxu0 %v79
    %765 = vmatpush.msra.mxu0 %v75
    %766 = vmatpush.msra.mxu0 %v71
    %767 = vmatpush.msra.mxu0 %v67
    %768 = vmatpush.msra.mxu0 %v63
    %769 = vmatpush.msra.mxu0 %v59
    %770 = vmatpush.msra.mxu0 %v55
    %771 = vmatpush.msra.mxu0 %v51
    %772 = vmatpush.msra.mxu0 %v47
    %773 = vmatpush.msra.mxu0 %v43
    %774 = vmatpush.msra.mxu0 %v39
    %775 = vmatmul.f32.gmra.mxu0 %v758
    %v776 = vpop.f32.mrf.mxu0
    %v777 = vadd.f32 0.0, %v776
    %778 = vdwg.mxu0
    %779 = vmatpush.msra.mxu0 %v100
    %780 = vmatpush.msra.mxu0 %v96
    %781 = vmatpush.msra.mxu0 %v92
    %782 = vmatpush.msra.mxu0 %v88
    %783 = vmatpush.msra.mxu0 %v84
    %784 = vmatpush.msra.mxu0 %v80
    %785 = vmatpush.msra.mxu0 %v76
    %786 = vmatpush.msra.mxu0 %v72
    %787 = vmatpush.msra.mxu0 %v68
    %788 = vmatpush.msra.mxu0 %v64
    %789 = vmatpush.msra.mxu0 %v60
    %790 = vmatpush.msra.mxu0 %v56
    %791 = vmatpush.msra.mxu0 %v52
    %792 = vmatpush.msra.mxu0 %v48
    %793 = vmatpush.msra.mxu0 %v44
    %794 = vmatpush.msra.mxu0 %v40
    %795 = vmatmul.f32.gmra.mxu0 %v758
    %v796 = vpop.f32.mrf.mxu0
    %v797 = vadd.f32 0.0, %v796
    %798 = vdwg.mxu0
    %799 = vmatpush.msra.mxu0 %v101
    %800 = vmatpush.msra.mxu0 %v97
    %801 = vmatpush.msra.mxu0 %v93
    %802 = vmatpush.msra.mxu0 %v89
    %803 = vmatpush.msra.mxu0 %v85
    %804 = vmatpush.msra.mxu0 %v81
    %805 = vmatpush.msra.mxu0 %v77
    %806 = vmatpush.msra.mxu0 %v73
    %807 = vmatpush.msra.mxu0 %v69
    %808 = vmatpush.msra.mxu0 %v65
    %809 = vmatpush.msra.mxu0 %v61
    %810 = vmatpush.msra.mxu0 %v57
    %811 = vmatpush.msra.mxu0 %v53
    %812 = vmatpush.msra.mxu0 %v49
    %813 = vmatpush.msra.mxu0 %v45
    %814 = vmatpush.msra.mxu0 %v41
    %815 = vmatmul.f32.gmra.mxu0 %v758
    %v816 = vpop.f32.mrf.mxu0
    %v817 = vadd.f32 0.0, %v816
    %818 = vdwg.mxu0
    %819 = vmatpush.msra.mxu0 %v102
    %820 = vmatpush.msra.mxu0 %v98
    %821 = vmatpush.msra.mxu0 %v94
    %822 = vmatpush.msra.mxu0 %v90
    %823 = vmatpush.msra.mxu0 %v86
    %824 = vmatpush.msra.mxu0 %v82
    %825 = vmatpush.msra.mxu0 %v78
    %826 = vmatpush.msra.mxu0 %v74
    %827 = vmatpush.msra.mxu0 %v70
    %828 = vmatpush.msra.mxu0 %v66
    %829 = vmatpush.msra.mxu0 %v62
    %830 = vmatpush.msra.mxu0 %v58
    %831 = vmatpush.msra.mxu0 %v54
    %832 = vmatpush.msra.mxu0 %v50
    %833 = vmatpush.msra.mxu0 %v46
    %834 = vmatpush.msra.mxu0 %v42
    %835 = vmatmul.f32.gmra.mxu0 %v758
    %v836 = vpop.f32.mrf.mxu0
    %v837 = vadd.f32 0.0, %v836
    %838 = vdwg.mxu0
    %v839 = vadd.f32 %v181, %v777
    %v840 = vadd.f32 %v222, %v797
    %v841 = vadd.f32 %v263, %v817
    %v842 = vadd.f32 %v304, %v837
    %v843 = vxor.u32 %v839, 2147483648
    %v844 = vmul.f32 %v843, 1.442695
    %v845 = vpow.pop %v844
    %v846 = vadd.f32 %v845, 1.0
    %v847 = vrcp.pop %v846
    %v848 = vmul.f32 %v846, %v847
    %v849 = vsub.f32 1.0, %v848
    %v850 = vmul.f32 %v847, %v849
    %v851 = vadd.f32 %v847, %v850
    %vm852 = vweird.f32 %v846
    %vm853 = vweird.f32 %v847
    %vm854 = vmor %vm852, %vm853
    %v855 = vsel %vm854, %v847, %v851
    %v856 = vand.u32 2147483647, %v846
    %vm857 = vcmp.eq.f32.partialorder %v856, 8.507059e+37
    %v858 = vand.u32 %v846, 2147483648
    %v859 = vor.u32 1.1754944e-38, %v858
    %v860 = vsel %vm857, %v859, %v855
    %v861 = vmul.f32 1.0, %v860
    %v862 = vxor.u32 %v840, 2147483648
    %v863 = vmul.f32 %v862, 1.442695
    %v864 = vpow.pop %v863
    %v865 = vadd.f32 %v864, 1.0
    %v866 = vrcp.pop %v865
    %v867 = vmul.f32 %v865, %v866
    %v868 = vsub.f32 1.0, %v867
    %v869 = vmul.f32 %v866, %v868
    %v870 = vadd.f32 %v866, %v869
    %vm871 = vweird.f32 %v865
    %vm872 = vweird.f32 %v866
    %vm873 = vmor %vm871, %vm872
    %v874 = vsel %vm873, %v866, %v870
    %v875 = vand.u32 2147483647, %v865
    %vm876 = vcmp.eq.f32.partialorder %v875, 8.507059e+37
    %v877 = vand.u32 %v865, 2147483648
    %v878 = vor.u32 1.1754944e-38, %v877
    %v879 = vsel %vm876, %v878, %v874
    %v880 = vmul.f32 1.0, %v879
    %v881 = vtanh.pop %v841
    %v882 = vxor.u32 %v842, 2147483648
    %v883 = vmul.f32 %v882, 1.442695
    %v884 = vpow.pop %v883
    %v885 = vadd.f32 %v884, 1.0
    %v886 = vrcp.pop %v885
    %v887 = vmul.f32 %v885, %v886
    %v888 = vsub.f32 1.0, %v887
    %v889 = vmul.f32 %v886, %v888
    %v890 = vadd.f32 %v886, %v889
    %vm891 = vweird.f32 %v885
    %vm892 = vweird.f32 %v886
    %vm893 = vmor %vm891, %vm892
    %v894 = vsel %vm893, %v886, %v890
    %v895 = vand.u32 2147483647, %v885
    %vm896 = vcmp.eq.f32.partialorder %v895, 8.507059e+37
    %v897 = vand.u32 %v885, 2147483648
    %v898 = vor.u32 1.1754944e-38, %v897
    %v899 = vsel %vm896, %v898, %v894
    %v900 = vmul.f32 1.0, %v899
    %v901 = vmul.f32 %v880, %v756
    %v902 = vmul.f32 %v861, %v881
    %v903 = vadd.f32 %v901, %v902
    %v904 = vtanh.pop %v903
    %v905 = vmul.f32 %v900, %v904
    %906 = vmatpush.msra.mxu0 %v99
    %907 = vmatpush.msra.mxu0 %v95
    %908 = vmatpush.msra.mxu0 %v91
    %909 = vmatpush.msra.mxu0 %v87
    %910 = vmatpush.msra.mxu0 %v83
    %911 = vmatpush.msra.mxu0 %v79
    %912 = vmatpush.msra.mxu0 %v75
    %913 = vmatpush.msra.mxu0 %v71
    %914 = vmatpush.msra.mxu0 %v67
    %915 = vmatpush.msra.mxu0 %v63
    %916 = vmatpush.msra.mxu0 %v59
    %917 = vmatpush.msra.mxu0 %v55
    %918 = vmatpush.msra.mxu0 %v51
    %919 = vmatpush.msra.mxu0 %v47
    %920 = vmatpush.msra.mxu0 %v43
    %921 = vmatpush.msra.mxu0 %v39
    %922 = vmatmul.f32.gmra.mxu0 %v905
    %v923 = vpop.f32.mrf.mxu0
    %v924 = vadd.f32 0.0, %v923
    %925 = vdwg.mxu0
    %926 = vmatpush.msra.mxu0 %v100
    %927 = vmatpush.msra.mxu0 %v96
    %928 = vmatpush.msra.mxu0 %v92
    %929 = vmatpush.msra.mxu0 %v88
    %930 = vmatpush.msra.mxu0 %v84
    %931 = vmatpush.msra.mxu0 %v80
    %932 = vmatpush.msra.mxu0 %v76
    %933 = vmatpush.msra.mxu0 %v72
    %934 = vmatpush.msra.mxu0 %v68
    %935 = vmatpush.msra.mxu0 %v64
    %936 = vmatpush.msra.mxu0 %v60
    %937 = vmatpush.msra.mxu0 %v56
    %938 = vmatpush.msra.mxu0 %v52
    %939 = vmatpush.msra.mxu0 %v48
    %940 = vmatpush.msra.mxu0 %v44
    %941 = vmatpush.msra.mxu0 %v40
    %942 = vmatmul.f32.gmra.mxu0 %v905
    %v943 = vpop.f32.mrf.mxu0
    %v944 = vadd.f32 0.0, %v943
    %945 = vdwg.mxu0
    %946 = vmatpush.msra.mxu0 %v101
    %947 = vmatpush.msra.mxu0 %v97
    %948 = vmatpush.msra.mxu0 %v93
    %949 = vmatpush.msra.mxu0 %v89
    %950 = vmatpush.msra.mxu0 %v85
    %951 = vmatpush.msra.mxu0 %v81
    %952 = vmatpush.msra.mxu0 %v77
    %953 = vmatpush.msra.mxu0 %v73
    %954 = vmatpush.msra.mxu0 %v69
    %955 = vmatpush.msra.mxu0 %v65
    %956 = vmatpush.msra.mxu0 %v61
    %957 = vmatpush.msra.mxu0 %v57
    %958 = vmatpush.msra.mxu0 %v53
    %959 = vmatpush.msra.mxu0 %v49
    %960 = vmatpush.msra.mxu0 %v45
    %961 = vmatpush.msra.mxu0 %v41
    %962 = vmatmul.f32.gmra.mxu0 %v905
    %v963 = vpop.f32.mrf.mxu0
    %v964 = vadd.f32 0.0, %v963
    %965 = vdwg.mxu0
    %966 = vmatpush.msra.mxu0 %v102
    %967 = vmatpush.msra.mxu0 %v98
    %968 = vmatpush.msra.mxu0 %v94
    %969 = vmatpush.msra.mxu0 %v90
    %970 = vmatpush.msra.mxu0 %v86
    %971 = vmatpush.msra.mxu0 %v82
    %972 = vmatpush.msra.mxu0 %v78
    %973 = vmatpush.msra.mxu0 %v74
    %974 = vmatpush.msra.mxu0 %v70
    %975 = vmatpush.msra.mxu0 %v66
    %976 = vmatpush.msra.mxu0 %v62
    %977 = vmatpush.msra.mxu0 %v58
    %978 = vmatpush.msra.mxu0 %v54
    %979 = vmatpush.msra.mxu0 %v50
    %980 = vmatpush.msra.mxu0 %v46
    %981 = vmatpush.msra.mxu0 %v42
    %982 = vmatmul.f32.gmra.mxu0 %v905
    %v983 = vpop.f32.mrf.mxu0
    %v984 = vadd.f32 0.0, %v983
    %985 = vdwg.mxu0
    %v986 = vadd.f32 %v184, %v924
    %v987 = vadd.f32 %v225, %v944
    %v988 = vadd.f32 %v266, %v964
    %v989 = vadd.f32 %v307, %v984
    %v990 = vxor.u32 %v986, 2147483648
    %v991 = vmul.f32 %v990, 1.442695
    %v992 = vpow.pop %v991
    %v993 = vadd.f32 %v992, 1.0
    %v994 = vrcp.pop %v993
    %v995 = vmul.f32 %v993, %v994
    %v996 = vsub.f32 1.0, %v995
    %v997 = vmul.f32 %v994, %v996
    %v998 = vadd.f32 %v994, %v997
    %vm999 = vweird.f32 %v993
    %vm1000 = vweird.f32 %v994
    %vm1001 = vmor %vm999, %vm1000
    %v1002 = vsel %vm1001, %v994, %v998
    %v1003 = vand.u32 2147483647, %v993
    %vm1004 = vcmp.eq.f32.partialorder %v1003, 8.507059e+37
    %v1005 = vand.u32 %v993, 2147483648
    %v1006 = vor.u32 1.1754944e-38, %v1005
    %v1007 = vsel %vm1004, %v1006, %v1002
    %v1008 = vmul.f32 1.0, %v1007
    %v1009 = vxor.u32 %v987, 2147483648
    %v1010 = vmul.f32 %v1009, 1.442695
    %v1011 = vpow.pop %v1010
    %v1012 = vadd.f32 %v1011, 1.0
    %v1013 = vrcp.pop %v1012
    %v1014 = vmul.f32 %v1012, %v1013
    %v1015 = vsub.f32 1.0, %v1014
    %v1016 = vmul.f32 %v1013, %v1015
    %v1017 = vadd.f32 %v1013, %v1016
    %vm1018 = vweird.f32 %v1012
    %vm1019 = vweird.f32 %v1013
    %vm1020 = vmor %vm1018, %vm1019
    %v1021 = vsel %vm1020, %v1013, %v1017
    %v1022 = vand.u32 2147483647, %v1012
    %vm1023 = vcmp.eq.f32.partialorder %v1022, 8.507059e+37
    %v1024 = vand.u32 %v1012, 2147483648
    %v1025 = vor.u32 1.1754944e-38, %v1024
    %v1026 = vsel %vm1023, %v1025, %v1021
    %v1027 = vmul.f32 1.0, %v1026
    %v1028 = vtanh.pop %v988
    %v1029 = vxor.u32 %v989, 2147483648
    %v1030 = vmul.f32 %v1029, 1.442695
    %v1031 = vpow.pop %v1030
    %v1032 = vadd.f32 %v1031, 1.0
    %v1033 = vrcp.pop %v1032
    %v1034 = vmul.f32 %v1032, %v1033
    %v1035 = vsub.f32 1.0, %v1034
    %v1036 = vmul.f32 %v1033, %v1035
    %v1037 = vadd.f32 %v1033, %v1036
    %vm1038 = vweird.f32 %v1032
    %vm1039 = vweird.f32 %v1033
    %vm1040 = vmor %vm1038, %vm1039
    %v1041 = vsel %vm1040, %v1033, %v1037
    %v1042 = vand.u32 2147483647, %v1032
    %vm1043 = vcmp.eq.f32.partialorder %v1042, 8.507059e+37
    %v1044 = vand.u32 %v1032, 2147483648
    %v1045 = vor.u32 1.1754944e-38, %v1044
    %v1046 = vsel %vm1043, %v1045, %v1041
    %v1047 = vmul.f32 1.0, %v1046
    %v1048 = vmul.f32 %v1027, %v903
    %v1049 = vmul.f32 %v1008, %v1028
    %v1050 = vadd.f32 %v1048, %v1049
    %v1051 = vtanh.pop %v1050
    %v1052 = vmul.f32 %v1047, %v1051
    %1053 = vmatpush.msra.mxu0 %v99
    %1054 = vmatpush.msra.mxu0 %v95
    %1055 = vmatpush.msra.mxu0 %v91
    %1056 = vmatpush.msra.mxu0 %v87
    %1057 = vmatpush.msra.mxu0 %v83
    %1058 = vmatpush.msra.mxu0 %v79
    %1059 = vmatpush.msra.mxu0 %v75
    %1060 = vmatpush.msra.mxu0 %v71
    %1061 = vmatpush.msra.mxu0 %v67
    %1062 = vmatpush.msra.mxu0 %v63
    %1063 = vmatpush.msra.mxu0 %v59
    %1064 = vmatpush.msra.mxu0 %v55
    %1065 = vmatpush.msra.mxu0 %v51
    %1066 = vmatpush.msra.mxu0 %v47
    %1067 = vmatpush.msra.mxu0 %v43
    %1068 = vmatpush.msra.mxu0 %v39
    %1069 = vmatmul.f32.gmra.mxu0 %v1052
    %v1070 = vpop.f32.mrf.mxu0
    %v1071 = vadd.f32 0.0, %v1070
    %1072 = vdwg.mxu0
    %1073 = vmatpush.msra.mxu0 %v100
    %1074 = vmatpush.msra.mxu0 %v96
    %1075 = vmatpush.msra.mxu0 %v92
    %1076 = vmatpush.msra.mxu0 %v88
    %1077 = vmatpush.msra.mxu0 %v84
    %1078 = vmatpush.msra.mxu0 %v80
    %1079 = vmatpush.msra.mxu0 %v76
    %1080 = vmatpush.msra.mxu0 %v72
    %1081 = vmatpush.msra.mxu0 %v68
    %1082 = vmatpush.msra.mxu0 %v64
    %1083 = vmatpush.msra.mxu0 %v60
    %1084 = vmatpush.msra.mxu0 %v56
    %1085 = vmatpush.msra.mxu0 %v52
    %1086 = vmatpush.msra.mxu0 %v48
    %1087 = vmatpush.msra.mxu0 %v44
    %1088 = vmatpush.msra.mxu0 %v40
    %1089 = vmatmul.f32.gmra.mxu0 %v1052
    %v1090 = vpop.f32.mrf.mxu0
    %v1091 = vadd.f32 0.0, %v1090
    %1092 = vdwg.mxu0
    %1093 = vmatpush.msra.mxu0 %v101
    %1094 = vmatpush.msra.mxu0 %v97
    %1095 = vmatpush.msra.mxu0 %v93
    %1096 = vmatpush.msra.mxu0 %v89
    %1097 = vmatpush.msra.mxu0 %v85
    %1098 = vmatpush.msra.mxu0 %v81
    %1099 = vmatpush.msra.mxu0 %v77
    %1100 = vmatpush.msra.mxu0 %v73
    %1101 = vmatpush.msra.mxu0 %v69
    %1102 = vmatpush.msra.mxu0 %v65
    %1103 = vmatpush.msra.mxu0 %v61
    %1104 = vmatpush.msra.mxu0 %v57
    %1105 = vmatpush.msra.mxu0 %v53
    %1106 = vmatpush.msra.mxu0 %v49
    %1107 = vmatpush.msra.mxu0 %v45
    %1108 = vmatpush.msra.mxu0 %v41
    %1109 = vmatmul.f32.gmra.mxu0 %v1052
    %v1110 = vpop.f32.mrf.mxu0
    %v1111 = vadd.f32 0.0, %v1110
    %1112 = vdwg.mxu0
    %1113 = vmatpush.msra.mxu0 %v102
    %1114 = vmatpush.msra.mxu0 %v98
    %1115 = vmatpush.msra.mxu0 %v94
    %1116 = vmatpush.msra.mxu0 %v90
    %1117 = vmatpush.msra.mxu0 %v86
    %1118 = vmatpush.msra.mxu0 %v82
    %1119 = vmatpush.msra.mxu0 %v78
    %1120 = vmatpush.msra.mxu0 %v74
    %1121 = vmatpush.msra.mxu0 %v70
    %1122 = vmatpush.msra.mxu0 %v66
    %1123 = vmatpush.msra.mxu0 %v62
    %1124 = vmatpush.msra.mxu0 %v58
    %1125 = vmatpush.msra.mxu0 %v54
    %1126 = vmatpush.msra.mxu0 %v50
    %1127 = vmatpush.msra.mxu0 %v46
    %1128 = vmatpush.msra.mxu0 %v42
    %1129 = vmatmul.f32.gmra.mxu0 %v1052
    %v1130 = vpop.f32.mrf.mxu0
    %v1131 = vadd.f32 0.0, %v1130
    %1132 = vdwg.mxu0
    %v1133 = vadd.f32 %v187, %v1071
    %v1134 = vadd.f32 %v228, %v1091
    %v1135 = vadd.f32 %v269, %v1111
    %v1136 = vadd.f32 %v310, %v1131
    %v1137 = vxor.u32 %v1133, 2147483648
    %v1138 = vmul.f32 %v1137, 1.442695
    %v1139 = vpow.pop %v1138
    %v1140 = vadd.f32 %v1139, 1.0
    %v1141 = vrcp.pop %v1140
    %v1142 = vmul.f32 %v1140, %v1141
    %v1143 = vsub.f32 1.0, %v1142
    %v1144 = vmul.f32 %v1141, %v1143
    %v1145 = vadd.f32 %v1141, %v1144
    %vm1146 = vweird.f32 %v1140
    %vm1147 = vweird.f32 %v1141
    %vm1148 = vmor %vm1146, %vm1147
    %v1149 = vsel %vm1148, %v1141, %v1145
    %v1150 = vand.u32 2147483647, %v1140
    %vm1151 = vcmp.eq.f32.partialorder %v1150, 8.507059e+37
    %v1152 = vand.u32 %v1140, 2147483648
    %v1153 = vor.u32 1.1754944e-38, %v1152
    %v1154 = vsel %vm1151, %v1153, %v1149
    %v1155 = vmul.f32 1.0, %v1154
    %v1156 = vxor.u32 %v1134, 2147483648
    %v1157 = vmul.f32 %v1156, 1.442695
    %v1158 = vpow.pop %v1157
    %v1159 = vadd.f32 %v1158, 1.0
    %v1160 = vrcp.pop %v1159
    %v1161 = vmul.f32 %v1159, %v1160
    %v1162 = vsub.f32 1.0, %v1161
    %v1163 = vmul.f32 %v1160, %v1162
    %v1164 = vadd.f32 %v1160, %v1163
    %vm1165 = vweird.f32 %v1159
    %vm1166 = vweird.f32 %v1160
    %vm1167 = vmor %vm1165, %vm1166
    %v1168 = vsel %vm1167, %v1160, %v1164
    %v1169 = vand.u32 2147483647, %v1159
    %vm1170 = vcmp.eq.f32.partialorder %v1169, 8.507059e+37
    %v1171 = vand.u32 %v1159, 2147483648
    %v1172 = vor.u32 1.1754944e-38, %v1171
    %v1173 = vsel %vm1170, %v1172, %v1168
    %v1174 = vmul.f32 1.0, %v1173
    %v1175 = vtanh.pop %v1135
    %v1176 = vxor.u32 %v1136, 2147483648
    %v1177 = vmul.f32 %v1176, 1.442695
    %v1178 = vpow.pop %v1177
    %v1179 = vadd.f32 %v1178, 1.0
    %v1180 = vrcp.pop %v1179
    %v1181 = vmul.f32 %v1179, %v1180
    %v1182 = vsub.f32 1.0, %v1181
    %v1183 = vmul.f32 %v1180, %v1182
    %v1184 = vadd.f32 %v1180, %v1183
    %vm1185 = vweird.f32 %v1179
    %vm1186 = vweird.f32 %v1180
    %vm1187 = vmor %vm1185, %vm1186
    %v1188 = vsel %vm1187, %v1180, %v1184
    %v1189 = vand.u32 2147483647, %v1179
    %vm1190 = vcmp.eq.f32.partialorder %v1189, 8.507059e+37
    %v1191 = vand.u32 %v1179, 2147483648
    %v1192 = vor.u32 1.1754944e-38, %v1191
    %v1193 = vsel %vm1190, %v1192, %v1188
    %v1194 = vmul.f32 1.0, %v1193
    %v1195 = vmul.f32 %v1174, %v1050
    %v1196 = vmul.f32 %v1155, %v1175
    %v1197 = vadd.f32 %v1195, %v1196
    %v1198 = vtanh.pop %v1197
    %v1199 = vmul.f32 %v1194, %v1198
    %1200 = vmatpush.msra.mxu0 %v99
    %1201 = vmatpush.msra.mxu0 %v95
    %1202 = vmatpush.msra.mxu0 %v91
    %1203 = vmatpush.msra.mxu0 %v87
    %1204 = vmatpush.msra.mxu0 %v83
    %1205 = vmatpush.msra.mxu0 %v79
    %1206 = vmatpush.msra.mxu0 %v75
    %1207 = vmatpush.msra.mxu0 %v71
    %1208 = vmatpush.msra.mxu0 %v67
    %1209 = vmatpush.msra.mxu0 %v63
    %1210 = vmatpush.msra.mxu0 %v59
    %1211 = vmatpush.msra.mxu0 %v55
    %1212 = vmatpush.msra.mxu0 %v51
    %1213 = vmatpush.msra.mxu0 %v47
    %1214 = vmatpush.msra.mxu0 %v43
    %1215 = vmatpush.msra.mxu0 %v39
    %1216 = vmatmul.f32.gmra.mxu0 %v1199
    %v1217 = vpop.f32.mrf.mxu0
    %v1218 = vadd.f32 0.0, %v1217
    %1219 = vdwg.mxu0
    %1220 = vmatpush.msra.mxu0 %v100
    %1221 = vmatpush.msra.mxu0 %v96
    %1222 = vmatpush.msra.mxu0 %v92
    %1223 = vmatpush.msra.mxu0 %v88
    %1224 = vmatpush.msra.mxu0 %v84
    %1225 = vmatpush.msra.mxu0 %v80
    %1226 = vmatpush.msra.mxu0 %v76
    %1227 = vmatpush.msra.mxu0 %v72
    %1228 = vmatpush.msra.mxu0 %v68
    %1229 = vmatpush.msra.mxu0 %v64
    %1230 = vmatpush.msra.mxu0 %v60
    %1231 = vmatpush.msra.mxu0 %v56
    %1232 = vmatpush.msra.mxu0 %v52
    %1233 = vmatpush.msra.mxu0 %v48
    %1234 = vmatpush.msra.mxu0 %v44
    %1235 = vmatpush.msra.mxu0 %v40
    %1236 = vmatmul.f32.gmra.mxu0 %v1199
    %v1237 = vpop.f32.mrf.mxu0
    %v1238 = vadd.f32 0.0, %v1237
    %1239 = vdwg.mxu0
    %1240 = vmatpush.msra.mxu0 %v101
    %1241 = vmatpush.msra.mxu0 %v97
    %1242 = vmatpush.msra.mxu0 %v93
    %1243 = vmatpush.msra.mxu0 %v89
    %1244 = vmatpush.msra.mxu0 %v85
    %1245 = vmatpush.msra.mxu0 %v81
    %1246 = vmatpush.msra.mxu0 %v77
    %1247 = vmatpush.msra.mxu0 %v73
    %1248 = vmatpush.msra.mxu0 %v69
    %1249 = vmatpush.msra.mxu0 %v65
    %1250 = vmatpush.msra.mxu0 %v61
    %1251 = vmatpush.msra.mxu0 %v57
    %1252 = vmatpush.msra.mxu0 %v53
    %1253 = vmatpush.msra.mxu0 %v49
    %1254 = vmatpush.msra.mxu0 %v45
    %1255 = vmatpush.msra.mxu0 %v41
    %1256 = vmatmul.f32.gmra.mxu0 %v1199
    %v1257 = vpop.f32.mrf.mxu0
    %v1258 = vadd.f32 0.0, %v1257
    %1259 = vdwg.mxu0
    %1260 = vmatpush.msra.mxu0 %v102
    %1261 = vmatpush.msra.mxu0 %v98
    %1262 = vmatpush.msra.mxu0 %v94
    %1263 = vmatpush.msra.mxu0 %v90
    %1264 = vmatpush.msra.mxu0 %v86
    %1265 = vmatpush.msra.mxu0 %v82
    %1266 = vmatpush.msra.mxu0 %v78
    %1267 = vmatpush.msra.mxu0 %v74
    %1268 = vmatpush.msra.mxu0 %v70
    %1269 = vmatpush.msra.mxu0 %v66
    %1270 = vmatpush.msra.mxu0 %v62
    %1271 = vmatpush.msra.mxu0 %v58
    %1272 = vmatpush.msra.mxu0 %v54
    %1273 = vmatpush.msra.mxu0 %v50
    %1274 = vmatpush.msra.mxu0 %v46
    %1275 = vmatpush.msra.mxu0 %v42
    %1276 = vmatmul.f32.gmra.mxu0 %v1199
    %v1277 = vpop.f32.mrf.mxu0
    %v1278 = vadd.f32 0.0, %v1277
    %1279 = vdwg.mxu0
    %v1280 = vadd.f32 %v190, %v1218
    %v1281 = vadd.f32 %v231, %v1238
    %v1282 = vadd.f32 %v272, %v1258
    %v1283 = vadd.f32 %v313, %v1278
    %v1284 = vxor.u32 %v1280, 2147483648
    %v1285 = vmul.f32 %v1284, 1.442695
    %v1286 = vpow.pop %v1285
    %v1287 = vadd.f32 %v1286, 1.0
    %v1288 = vrcp.pop %v1287
    %v1289 = vmul.f32 %v1287, %v1288
    %v1290 = vsub.f32 1.0, %v1289
    %v1291 = vmul.f32 %v1288, %v1290
    %v1292 = vadd.f32 %v1288, %v1291
    %vm1293 = vweird.f32 %v1287
    %vm1294 = vweird.f32 %v1288
    %vm1295 = vmor %vm1293, %vm1294
    %v1296 = vsel %vm1295, %v1288, %v1292
    %v1297 = vand.u32 2147483647, %v1287
    %vm1298 = vcmp.eq.f32.partialorder %v1297, 8.507059e+37
    %v1299 = vand.u32 %v1287, 2147483648
    %v1300 = vor.u32 1.1754944e-38, %v1299
    %v1301 = vsel %vm1298, %v1300, %v1296
    %v1302 = vmul.f32 1.0, %v1301
    %v1303 = vxor.u32 %v1281, 2147483648
    %v1304 = vmul.f32 %v1303, 1.442695
    %v1305 = vpow.pop %v1304
    %v1306 = vadd.f32 %v1305, 1.0
    %v1307 = vrcp.pop %v1306
    %v1308 = vmul.f32 %v1306, %v1307
    %v1309 = vsub.f32 1.0, %v1308
    %v1310 = vmul.f32 %v1307, %v1309
    %v1311 = vadd.f32 %v1307, %v1310
    %vm1312 = vweird.f32 %v1306
    %vm1313 = vweird.f32 %v1307
    %vm1314 = vmor %vm1312, %vm1313
    %v1315 = vsel %vm1314, %v1307, %v1311
    %v1316 = vand.u32 2147483647, %v1306
    %vm1317 = vcmp.eq.f32.partialorder %v1316, 8.507059e+37
    %v1318 = vand.u32 %v1306, 2147483648
    %v1319 = vor.u32 1.1754944e-38, %v1318
    %v1320 = vsel %vm1317, %v1319, %v1315
    %v1321 = vmul.f32 1.0, %v1320
    %v1322 = vtanh.pop %v1282
    %v1323 = vxor.u32 %v1283, 2147483648
    %v1324 = vmul.f32 %v1323, 1.442695
    %v1325 = vpow.pop %v1324
    %v1326 = vadd.f32 %v1325, 1.0
    %v1327 = vrcp.pop %v1326
    %v1328 = vmul.f32 %v1326, %v1327
    %v1329 = vsub.f32 1.0, %v1328
    %v1330 = vmul.f32 %v1327, %v1329
    %v1331 = vadd.f32 %v1327, %v1330
    %vm1332 = vweird.f32 %v1326
    %vm1333 = vweird.f32 %v1327
    %vm1334 = vmor %vm1332, %vm1333
    %v1335 = vsel %vm1334, %v1327, %v1331
    %v1336 = vand.u32 2147483647, %v1326
    %vm1337 = vcmp.eq.f32.partialorder %v1336, 8.507059e+37
    %v1338 = vand.u32 %v1326, 2147483648
    %v1339 = vor.u32 1.1754944e-38, %v1338
    %v1340 = vsel %vm1337, %v1339, %v1335
    %v1341 = vmul.f32 1.0, %v1340
    %v1342 = vmul.f32 %v1321, %v1197
    %v1343 = vmul.f32 %v1302, %v1322
    %v1344 = vadd.f32 %v1342, %v1343
    %v1345 = vtanh.pop %v1344
    %v1346 = vmul.f32 %v1341, %v1345
    %1347 = vmatpush.msra.mxu0 %v99
    %1348 = vmatpush.msra.mxu0 %v95
    %1349 = vmatpush.msra.mxu0 %v91
    %1350 = vmatpush.msra.mxu0 %v87
    %1351 = vmatpush.msra.mxu0 %v83
    %1352 = vmatpush.msra.mxu0 %v79
    %1353 = vmatpush.msra.mxu0 %v75
    %1354 = vmatpush.msra.mxu0 %v71
    %1355 = vmatpush.msra.mxu0 %v67
    %1356 = vmatpush.msra.mxu0 %v63
    %1357 = vmatpush.msra.mxu0 %v59
    %1358 = vmatpush.msra.mxu0 %v55
    %1359 = vmatpush.msra.mxu0 %v51
    %1360 = vmatpush.msra.mxu0 %v47
    %1361 = vmatpush.msra.mxu0 %v43
    %1362 = vmatpush.msra.mxu0 %v39
    %1363 = vmatmul.f32.gmra.mxu0 %v1346
    %v1364 = vpop.f32.mrf.mxu0
    %v1365 = vadd.f32 0.0, %v1364
    %1366 = vdwg.mxu0
    %1367 = vmatpush.msra.mxu0 %v100
    %1368 = vmatpush.msra.mxu0 %v96
    %1369 = vmatpush.msra.mxu0 %v92
    %1370 = vmatpush.msra.mxu0 %v88
    %1371 = vmatpush.msra.mxu0 %v84
    %1372 = vmatpush.msra.mxu0 %v80
    %1373 = vmatpush.msra.mxu0 %v76
    %1374 = vmatpush.msra.mxu0 %v72
    %1375 = vmatpush.msra.mxu0 %v68
    %1376 = vmatpush.msra.mxu0 %v64
    %1377 = vmatpush.msra.mxu0 %v60
    %1378 = vmatpush.msra.mxu0 %v56
    %1379 = vmatpush.msra.mxu0 %v52
    %1380 = vmatpush.msra.mxu0 %v48
    %1381 = vmatpush.msra.mxu0 %v44
    %1382 = vmatpush.msra.mxu0 %v40
    %1383 = vmatmul.f32.gmra.mxu0 %v1346
    %v1384 = vpop.f32.mrf.mxu0
    %v1385 = vadd.f32 0.0, %v1384
    %1386 = vdwg.mxu0
    %1387 = vmatpush.msra.mxu0 %v101
    %1388 = vmatpush.msra.mxu0 %v97
    %1389 = vmatpush.msra.mxu0 %v93
    %1390 = vmatpush.msra.mxu0 %v89
    %1391 = vmatpush.msra.mxu0 %v85
    %1392 = vmatpush.msra.mxu0 %v81
    %1393 = vmatpush.msra.mxu0 %v77
    %1394 = vmatpush.msra.mxu0 %v73
    %1395 = vmatpush.msra.mxu0 %v69
    %1396 = vmatpush.msra.mxu0 %v65
    %1397 = vmatpush.msra.mxu0 %v61
    %1398 = vmatpush.msra.mxu0 %v57
    %1399 = vmatpush.msra.mxu0 %v53
    %1400 = vmatpush.msra.mxu0 %v49
    %1401 = vmatpush.msra.mxu0 %v45
    %1402 = vmatpush.msra.mxu0 %v41
    %1403 = vmatmul.f32.gmra.mxu0 %v1346
    %v1404 = vpop.f32.mrf.mxu0
    %v1405 = vadd.f32 0.0, %v1404
    %1406 = vdwg.mxu0
    %1407 = vmatpush.msra.mxu0 %v102
    %1408 = vmatpush.msra.mxu0 %v98
    %1409 = vmatpush.msra.mxu0 %v94
    %1410 = vmatpush.msra.mxu0 %v90
    %1411 = vmatpush.msra.mxu0 %v86
    %1412 = vmatpush.msra.mxu0 %v82
    %1413 = vmatpush.msra.mxu0 %v78
    %1414 = vmatpush.msra.mxu0 %v74
    %1415 = vmatpush.msra.mxu0 %v70
    %1416 = vmatpush.msra.mxu0 %v66
    %1417 = vmatpush.msra.mxu0 %v62
    %1418 = vmatpush.msra.mxu0 %v58
    %1419 = vmatpush.msra.mxu0 %v54
    %1420 = vmatpush.msra.mxu0 %v50
    %1421 = vmatpush.msra.mxu0 %v46
    %1422 = vmatpush.msra.mxu0 %v42
    %1423 = vmatmul.f32.gmra.mxu0 %v1346
    %v1424 = vpop.f32.mrf.mxu0
    %v1425 = vadd.f32 0.0, %v1424
    %1426 = vdwg.mxu0
    %v1427 = vadd.f32 %v193, %v1365
    %v1428 = vadd.f32 %v234, %v1385
    %v1429 = vadd.f32 %v275, %v1405
    %v1430 = vadd.f32 %v316, %v1425
    %v1431 = vxor.u32 %v1427, 2147483648
    %v1432 = vmul.f32 %v1431, 1.442695
    %v1433 = vpow.pop %v1432
    %v1434 = vadd.f32 %v1433, 1.0
    %v1435 = vrcp.pop %v1434
    %v1436 = vmul.f32 %v1434, %v1435
    %v1437 = vsub.f32 1.0, %v1436
    %v1438 = vmul.f32 %v1435, %v1437
    %v1439 = vadd.f32 %v1435, %v1438
    %vm1440 = vweird.f32 %v1434
    %vm1441 = vweird.f32 %v1435
    %vm1442 = vmor %vm1440, %vm1441
    %v1443 = vsel %vm1442, %v1435, %v1439
    %v1444 = vand.u32 2147483647, %v1434
    %vm1445 = vcmp.eq.f32.partialorder %v1444, 8.507059e+37
    %v1446 = vand.u32 %v1434, 2147483648
    %v1447 = vor.u32 1.1754944e-38, %v1446
    %v1448 = vsel %vm1445, %v1447, %v1443
    %v1449 = vmul.f32 1.0, %v1448
    %v1450 = vxor.u32 %v1428, 2147483648
    %v1451 = vmul.f32 %v1450, 1.442695
    %v1452 = vpow.pop %v1451
    %v1453 = vadd.f32 %v1452, 1.0
    %v1454 = vrcp.pop %v1453
    %v1455 = vmul.f32 %v1453, %v1454
    %v1456 = vsub.f32 1.0, %v1455
    %v1457 = vmul.f32 %v1454, %v1456
    %v1458 = vadd.f32 %v1454, %v1457
    %vm1459 = vweird.f32 %v1453
    %vm1460 = vweird.f32 %v1454
    %vm1461 = vmor %vm1459, %vm1460
    %v1462 = vsel %vm1461, %v1454, %v1458
    %v1463 = vand.u32 2147483647, %v1453
    %vm1464 = vcmp.eq.f32.partialorder %v1463, 8.507059e+37
    %v1465 = vand.u32 %v1453, 2147483648
    %v1466 = vor.u32 1.1754944e-38, %v1465
    %v1467 = vsel %vm1464, %v1466, %v1462
    %v1468 = vmul.f32 1.0, %v1467
    %v1469 = vtanh.pop %v1429
    %v1470 = vxor.u32 %v1430, 2147483648
    %v1471 = vmul.f32 %v1470, 1.442695
    %v1472 = vpow.pop %v1471
    %v1473 = vadd.f32 %v1472, 1.0
    %v1474 = vrcp.pop %v1473
    %v1475 = vmul.f32 %v1473, %v1474
    %v1476 = vsub.f32 1.0, %v1475
    %v1477 = vmul.f32 %v1474, %v1476
    %v1478 = vadd.f32 %v1474, %v1477
    %vm1479 = vweird.f32 %v1473
    %vm1480 = vweird.f32 %v1474
    %vm1481 = vmor %vm1479, %vm1480
    %v1482 = vsel %vm1481, %v1474, %v1478
    %v1483 = vand.u32 2147483647, %v1473
    %vm1484 = vcmp.eq.f32.partialorder %v1483, 8.507059e+37
    %v1485 = vand.u32 %v1473, 2147483648
    %v1486 = vor.u32 1.1754944e-38, %v1485
    %v1487 = vsel %vm1484, %v1486, %v1482
    %v1488 = vmul.f32 1.0, %v1487
    %v1489 = vmul.f32 %v1468, %v1344
    %v1490 = vmul.f32 %v1449, %v1469
    %v1491 = vadd.f32 %v1489, %v1490
    %v1492 = vtanh.pop %v1491
    %v1493 = vmul.f32 %v1488, %v1492
    %v1494 = vld [vmem:[%s4] sm:$0xff]
    %v1495 = vld [vmem:[%s4 + $0x8] sm:$0xff]
    %v1496 = vld [vmem:[%s4 + $0x10] sm:$0xff]
    %v1497 = vld [vmem:[%s4 + $0x18] sm:$0xff]
    %v1498 = vld [vmem:[%s4 + $0x20] sm:$0xff]
    %v1499 = vld [vmem:[%s4 + $0x28] sm:$0xff]
    %v1500 = vld [vmem:[%s4 + $0x30] sm:$0xff]
    %v1501 = vld [vmem:[%s4 + $0x38] sm:$0xff]
    %v1502 = vld [vmem:[%s4 + $0x40] sm:$0xff]
    %v1503 = vld [vmem:[%s4 + $0x48] sm:$0xff]
    %v1504 = vld [vmem:[%s4 + $0x50] sm:$0xff]
    %v1505 = vld [vmem:[%s4 + $0x58] sm:$0xff]
    %v1506 = vld [vmem:[%s4 + $0x60] sm:$0xff]
    %v1507 = vld [vmem:[%s4 + $0x68] sm:$0xff]
    %v1508 = vld [vmem:[%s4 + $0x70] sm:$0xff]
    %v1509 = vld [vmem:[%s4 + $0x78] sm:$0xff]
    %v1510 = vld [vmem:[%s5] sm:$0x1]
    %v1512 = vperm.slane %v1510, 0
    %1514 = vmatpush.msra.mxu0 %v1509
    %1515 = vmatpush.msra.mxu0 %v1508
    %1516 = vmatpush.msra.mxu0 %v1507
    %1517 = vmatpush.msra.mxu0 %v1506
    %1518 = vmatpush.msra.mxu0 %v1505
    %1519 = vmatpush.msra.mxu0 %v1504
    %1520 = vmatpush.msra.mxu0 %v1503
    %1521 = vmatpush.msra.mxu0 %v1502
    %1522 = vmatpush.msra.mxu0 %v1501
    %1523 = vmatpush.msra.mxu0 %v1500
    %1524 = vmatpush.msra.mxu0 %v1499
    %1525 = vmatpush.msra.mxu0 %v1498
    %1526 = vmatpush.msra.mxu0 %v1497
    %1527 = vmatpush.msra.mxu0 %v1496
    %1528 = vmatpush.msra.mxu0 %v1495
    %1529 = vmatpush.msra.mxu0 %v1494
    %1530 = vmatmul.f32.gmra.mxu0 %v1493
    %v1531 = vpop.f32.mrf.mxu0
    %v1532 = vadd.f32 %v1512, %v1531
    %1533 = vdwg.mxu0
    %1534 = vst [vmem:[%s6] sm:$0xff] %v1532
    // Predicated region
    $region30: #{multi_sensor_lstm_forward.1} parent=1 // pred_check
      _
    $region31: #{multi_sensor_lstm_forward.1} parent=1 // pred_check_branch
      %1536 = sbr.rel (0) target = $region33
    $region32: #{multi_sensor_lstm_forward.1} parent=1 // pred_region
      _
    $region33: #{multi_sensor_lstm_forward.1} parent=1 // pred_fallthru
      _
    // Predicated region
    $region34: #{multi_sensor_lstm_forward.1} parent=1 // pred_check
      _
    $region35: #{multi_sensor_lstm_forward.1} parent=1 // pred_check_branch
      %1538 = sbr.rel (0) target = $region37
    $region36: #{multi_sensor_lstm_forward.1} parent=1 // pred_region
      _
    $region37: #{multi_sensor_lstm_forward.1} parent=1 // pred_fallthru
      _
    %1539 = vsyncpa [#allocation3], 1

</llo_original>
